<compile_context>
chip_gen: v5e
topology: v5e:2x2
jax: 0.10.0
libtpu: 0.0.40
codegen_flags: <defaults>
</compile_context>

<pallas_src>
import jax
import jax.numpy as jnp
from jax.experimental import pallas as pl
from jax.experimental.pallas import tpu as pltpu

LATENT_DIM = 2
IN_DIM = 784
HIDDEN = 256
LANE = 128
IN_PAD = 896          # 7 * 128  (784 rounded up to a lane multiple)
DEC_K = 8             # zero-padded contraction size for the decoder-input matmul
Q_OUT = 2 * LATENT_DIM


def _round_up(a, m):
    return ((a + m - 1) // m) * m


def _vae_kernel(x_ref, eps_ref,
                w1_ref, b1_ref, w2_ref, b2_ref,
                w3_ref, b3_ref, w4_ref, b4_ref,
                xhat_ref, q_ref):
    # ---- encoder: Linear(784->256) + ReLU  (bf16 MXU, f32 accumulate) ----
    h1 = jnp.dot(x_ref[...], w1_ref[...],
                 preferred_element_type=jnp.float32) + b1_ref[...]
    h1 = jnp.maximum(h1, 0.0)

    # ---- encoder head: Linear(256 -> 2*latent), lane-padded to 128 cols ----
    # bf16 operands, f32 accumulate; only the 4 real lanes are written out.
    q = jnp.dot(h1.astype(jnp.bfloat16), w2_ref[...],
                preferred_element_type=jnp.float32) + b2_ref[...]
    q_ref[...] = q[:, :Q_OUT]                    # [mu | logvar], f32

    # ---- reparameterize (vectorized) + decoder Linear(latent->256) ----
    # q lanes: [mu0, mu1, lv0, lv1, 0, ...].  Work in an 8-lane slab:
    #   mu8 = lanes [0:8)          -> [mu | logvar | 0 0 0 0]
    #   lv8 = lanes [2:10)         -> [logvar | 0 ...]
    # Lanes >= LATENT_DIM of z8 hold junk, but the matching rows of the
    # zero-padded w3 are zero, so they contribute nothing to the dot.
    mu8 = q[:, :DEC_K]
    lv8 = q[:, LATENT_DIM:LATENT_DIM + DEC_K]
    z8 = mu8 + eps_ref[...] * jnp.exp(0.5 * lv8)           # (TB, 8)
    h2 = jnp.dot(z8, w3_ref[...],
                 preferred_element_type=jnp.float32) + b3_ref[...]
    h2 = jnp.maximum(h2, 0.0)

    # ---- decoder: Linear(256->784) + Sigmoid  (bf16 MXU, EUP reciprocal) ----
    logits = jnp.dot(h2.astype(jnp.bfloat16), w4_ref[...],
                     preferred_element_type=jnp.float32) + b4_ref[...]
    sig = pl.reciprocal(1.0 + jnp.exp(-logits), approx=True)
    xhat_ref[...] = sig.astype(xhat_ref.dtype)              # bf16 writeback


def bernoulli_vae_forward(x, eps, params, *, block_rows=1024):
    """x: (B, 1, 28, 28) float32 (NCHW).  eps: (B, latent) ~ N(0,1).

    Returns (x_hat[bf16], mu[f32], logvar[f32]).  x_hat is bf16 so downstream
    consumers (e.g. the BCE loss) can consume it directly without an extra
    HBM round trip; cast to f32 if strict parity with PyTorch is needed.
    """
    B = x.shape[0]
    x_flat = x.reshape(B, -1).astype(jnp.float32)      # == torch x.view(B, -1)

    (w1, b1), (w2, b2), (w3, b3), (w4, b4) = params

    # --- batch tiling: >=2 tiles for B > 16 (v7x megacore), tiles up to 1024 ---
    TB = min(block_rows, max(16, _round_up((B + 1) // 2, 16)))
    B_pad = _round_up(B, TB)
    num_blocks = B_pad // TB

    # --- pad / transpose / cast operands (wrapper side; x/eps producers may be
    #     fused into the pallas_call via allow_input_fusion) ---
    x_p = jnp.zeros((B_pad, IN_PAD), jnp.bfloat16)
    x_p = x_p.at[:B, :IN_DIM].set(x_flat.astype(jnp.bfloat16))
    eps_p = jnp.zeros((B_pad, DEC_K), jnp.float32).at[:B, :LATENT_DIM].set(eps)

    w1_p = jnp.zeros((IN_PAD, HIDDEN), jnp.bfloat16)
    w1_p = w1_p.at[:IN_DIM, :].set(w1.T.astype(jnp.bfloat16))
    b1_p = b1.reshape(1, HIDDEN).astype(jnp.float32)

    w2_p = jnp.zeros((HIDDEN, LANE), jnp.bfloat16)
    w2_p = w2_p.at[:, :Q_OUT].set(w2.T.astype(jnp.bfloat16))
    b2_p = jnp.zeros((1, LANE), jnp.float32).at[:, :Q_OUT].set(b2.reshape(1, -1))

    w3_p = jnp.zeros((DEC_K, HIDDEN), jnp.float32)
    w3_p = w3_p.at[:LATENT_DIM, :].set(w3.T.astype(jnp.float32))
    b3_p = b3.reshape(1, HIDDEN).astype(jnp.float32)

    w4_p = jnp.zeros((HIDDEN, IN_PAD), jnp.bfloat16)
    w4_p = w4_p.at[:, :IN_DIM].set(w4.T.astype(jnp.bfloat16))
    b4_p = jnp.zeros((1, IN_PAD), jnp.float32).at[:, :IN_DIM].set(b4.reshape(1, -1))

    def batch_spec(shape):
        return pl.BlockSpec(shape, lambda i: (i, 0))

    def fixed_spec(shape):
        return pl.BlockSpec(shape, lambda i: (0, 0))

    in_specs = [
        batch_spec((TB, IN_PAD)),           # x (bf16, lane-dense)
        batch_spec((TB, DEC_K)),            # eps (8 lanes, full-row block)
        fixed_spec((IN_PAD, HIDDEN)),       # w1 (bf16, VMEM-resident)
        fixed_spec((1, HIDDEN)),            # b1
        fixed_spec((HIDDEN, LANE)),         # w2 (bf16, padded to 128 out lanes)
        fixed_spec((1, LANE)),              # b2
        fixed_spec((DEC_K, HIDDEN)),        # w3 (zero-padded rows >= latent)
        fixed_spec((1, HIDDEN)),            # b3
        fixed_spec((HIDDEN, IN_PAD)),       # w4 (bf16, VMEM-resident)
        fixed_spec((1, IN_PAD)),            # b4
    ]
    out_specs = (
        batch_spec((TB, IN_PAD)),           # x_hat (bf16, lane-dense)
        batch_spec((TB, Q_OUT)),            # [mu | logvar] (f32, full-row block)
    )
    out_shapes = (
        jax.ShapeDtypeStruct((B_pad, IN_PAD), jnp.bfloat16),
        jax.ShapeDtypeStruct((B_pad, Q_OUT), jnp.float32),
    )

    flops = 2 * B_pad * (IN_PAD * HIDDEN + HIDDEN * LANE
                         + DEC_K * HIDDEN + HIDDEN * IN_PAD)
    transcendentals = B_pad * (IN_PAD + DEC_K)
    bytes_accessed = (
        x_p.size * 2 + eps_p.size * 4
        + (w1_p.size + w2_p.size + w4_p.size) * 2
        + w3_p.size * 4
        + (b1_p.size + b2_p.size + b3_p.size + b4_p.size) * 4
        + B_pad * IN_PAD * 2            # x_hat (bf16)
        + B_pad * Q_OUT * 4             # mu|logvar (f32)
    )

    xhat_p, q_out = pl.pallas_call(
        _vae_kernel,
        grid=(num_blocks,),
        in_specs=in_specs,
        out_specs=out_specs,
        out_shape=out_shapes,
        compiler_params=pltpu.CompilerParams(
            dimension_semantics=("parallel",),
            vmem_limit_bytes=32 * 1024 * 1024,
            allow_input_fusion=[True, True] + [False] * 8,
        ),
        cost_estimate=pl.CostEstimate(
            flops=flops,
            transcendentals=transcendentals,
            bytes_accessed=bytes_accessed,
        ),
    )(x_p, eps_p, w1_p, b1_p, w2_p, b2_p, w3_p, b3_p, w4_p, b4_p)

    # NOTE: padded lanes/rows of xhat_p hold garbage (sigmoid(0)=0.5 etc.);
    # downstream losses should use these sliced views, not the padded array.
    x_hat = xhat_p[:B, :IN_DIM]                        # bf16
    mu = q_out[:B, :LATENT_DIM]
    logvar = q_out[:B, LATENT_DIM:Q_OUT]
    return x_hat, mu, logvar


def init_params(key, latent_dim=LATENT_DIM):
    """Deterministic PyTorch-Linear-style (uniform) init; weights are (out, in)."""
    def linear(key, fan_in, fan_out):
        k_w, k_b = jax.random.split(key)
        bound = 1.0 / jnp.sqrt(fan_in)
        w = jax.random.uniform(k_w, (fan_out, fan_in), jnp.float32, -bound, bound)
        b = jax.random.uniform(k_b, (fan_out,), jnp.float32, -bound, bound)
        return w, b

    k1, k2, k3, k4 = jax.random.split(key, 4)
    return (
        linear(k1, IN_DIM, HIDDEN),              # encoder[0]: Linear(784, 256)
        linear(k2, HIDDEN, latent_dim * 2),      # encoder[2]: Linear(256, 2*latent)
        linear(k3, latent_dim, HIDDEN),          # decoder[0]: Linear(latent, 256)
        linear(k4, HIDDEN, IN_DIM),              # decoder[2]: Linear(256, 784)
    )


def _reference_forward(x, eps, params):
    """Pure-JAX reference mirroring the kernel's precision policy
    (bf16 operands into the three MXU matmuls, f32 accumulate/elementwise)."""
    (w1, b1), (w2, b2), (w3, b3), (w4, b4) = params
    B = x.shape[0]
    xf = x.reshape(B, -1)

    def bf16(a):
        return a.astype(jnp.bfloat16).astype(jnp.float32)

    hi = jax.lax.Precision.HIGHEST
    h1 = jnp.maximum(jnp.dot(bf16(xf), bf16(w1.T), precision=hi) + b1, 0.0)
    q = jnp.dot(bf16(h1), bf16(w2.T), precision=hi) + b2
    mu, logvar = q[:, :LATENT_DIM], q[:, LATENT_DIM:]
    z = mu + eps * jnp.exp(0.5 * logvar)
    h2 = jnp.maximum(jnp.dot(z, w3.T, precision=hi) + b3, 0.0)
    logits = jnp.dot(bf16(h2), bf16(w4.T), precision=hi) + b4
    return jax.nn.sigmoid(logits), mu, logvar


if __name__ == "__main__":
    key = jax.random.PRNGKey(0)
    k_params, k_x, k_eps = jax.random.split(key, 3)

    B = 8
    x = jax.random.uniform(k_x, (B, 1, 28, 28), jnp.float32)        # NCHW like PyTorch
    eps = jax.random.normal(k_eps, (B, LATENT_DIM), jnp.float32)    # reparameterization noise
    params = init_params(k_params)

    xhat, mu, logvar = bernoulli_vae_forward(x, eps, params)
    jax.block_until_ready((xhat, mu, logvar))

    # correctness check vs precision-matched pure-JAX reference
    r_xhat, r_mu, r_logvar = _reference_forward(x, eps, params)
    assert xhat.shape == (B, IN_DIM) and mu.shape == (B, LATENT_DIM)
    assert logvar.shape == (B, LATENT_DIM)
    assert jnp.allclose(mu, r_mu, atol=3e-3), "mu mismatch"
    assert jnp.allclose(logvar, r_logvar, atol=3e-3), "logvar mismatch"
    assert jnp.allclose(xhat.astype(jnp.float32), r_xhat, atol=1.5e-2), "xhat mismatch"

    print("KERNEL_OK")
</pallas_src>

<mosaic_0001>
module attributes {stable_mosaic.version = 11 : i64} {
  func.func @_vae_kernel(%arg0: i32, %arg1: memref<16x896xbf16, #tpu.memory_space<vmem>>, %arg2: memref<16x8xf32, #tpu.memory_space<vmem>>, %arg3: memref<896x256xbf16, #tpu.memory_space<vmem>>, %arg4: memref<1x256xf32, #tpu.memory_space<vmem>>, %arg5: memref<256x128xbf16, #tpu.memory_space<vmem>>, %arg6: memref<1x128xf32, #tpu.memory_space<vmem>>, %arg7: memref<8x256xf32, #tpu.memory_space<vmem>>, %arg8: memref<1x256xf32, #tpu.memory_space<vmem>>, %arg9: memref<256x896xbf16, #tpu.memory_space<vmem>>, %arg10: memref<1x896xf32, #tpu.memory_space<vmem>>, %arg11: memref<16x896xbf16, #tpu.memory_space<vmem>>, %arg12: memref<16x4xf32, #tpu.memory_space<vmem>>) attributes {dimension_semantics = [#tpu.dimension_semantics<parallel>], iteration_bounds = array<i64: 1>, scalar_prefetch = 0 : i64, scratch_operands = 0 : i64, tpu.core_type = #tpu.core_type<tc>, window_params = [{transform_indices = @transform_0, window_bounds = array<i64: 16, 896>}, {transform_indices = @transform_1, window_bounds = array<i64: 16, 8>}, {pipeline_mode = #tpu.pipeline_mode<synchronous>, transform_indices = @transform_2, window_bounds = array<i64: 896, 256>}, {pipeline_mode = #tpu.pipeline_mode<synchronous>, transform_indices = @transform_3, window_bounds = array<i64: 1, 256>}, {pipeline_mode = #tpu.pipeline_mode<synchronous>, transform_indices = @transform_4, window_bounds = array<i64: 256, 128>}, {pipeline_mode = #tpu.pipeline_mode<synchronous>, transform_indices = @transform_5, window_bounds = array<i64: 1, 128>}, {pipeline_mode = #tpu.pipeline_mode<synchronous>, transform_indices = @transform_6, window_bounds = array<i64: 8, 256>}, {pipeline_mode = #tpu.pipeline_mode<synchronous>, transform_indices = @transform_7, window_bounds = array<i64: 1, 256>}, {pipeline_mode = #tpu.pipeline_mode<synchronous>, transform_indices = @transform_8, window_bounds = array<i64: 256, 896>}, {pipeline_mode = #tpu.pipeline_mode<synchronous>, transform_indices = @transform_9, window_bounds = array<i64: 1, 896>}, {transform_indices = @transform_10, window_bounds = array<i64: 16, 896>}, {transform_indices = @transform_11, window_bounds = array<i64: 16, 4>}]} {
    %c0 = arith.constant 0 : index
    %c0_0 = arith.constant 0 : index
    %0 = vector.load %arg1[%c0, %c0_0] : memref<16x896xbf16, #tpu.memory_space<vmem>>, vector<16x896xbf16>
    %c0_1 = arith.constant 0 : index
    %c0_2 = arith.constant 0 : index
    %1 = vector.load %arg3[%c0_1, %c0_2] : memref<896x256xbf16, #tpu.memory_space<vmem>>, vector<896x256xbf16>
    %cst = arith.constant dense<0.000000e+00> : vector<16x256xf32>
    %2 = tpu.matmul %0, %1, %cst {dimension_numbers = #tpu.dot_dimension_numbers<[1], [0], [0], [1], [0, 0, 1, 1], [], []>} : vector<16x896xbf16>, vector<896x256xbf16>, vector<16x256xf32> -> vector<16x256xf32>
    %c0_3 = arith.constant 0 : index
    %c0_4 = arith.constant 0 : index
    %3 = vector.load %arg4[%c0_3, %c0_4] : memref<1x256xf32, #tpu.memory_space<vmem>>, vector<1x256xf32>
    %4 = vector.broadcast %3 : vector<1x256xf32> to vector<16x256xf32>
    %5 = arith.addf %2, %4 : vector<16x256xf32>
    %cst_5 = arith.constant 0.000000e+00 : f32
    %6 = vector.broadcast %cst_5 : f32 to vector<16x256xf32>
    %7 = arith.maximumf %5, %6 : vector<16x256xf32>
    %8 = arith.truncf %7 : vector<16x256xf32> to vector<16x256xbf16>
    %c0_6 = arith.constant 0 : index
    %c0_7 = arith.constant 0 : index
    %9 = vector.load %arg5[%c0_6, %c0_7] : memref<256x128xbf16, #tpu.memory_space<vmem>>, vector<256x128xbf16>
    %cst_8 = arith.constant dense<0.000000e+00> : vector<16x128xf32>
    %10 = tpu.matmul %8, %9, %cst_8 {dimension_numbers = #tpu.dot_dimension_numbers<[1], [0], [0], [1], [0, 0, 1, 1], [], []>} : vector<16x256xbf16>, vector<256x128xbf16>, vector<16x128xf32> -> vector<16x128xf32>
    %c0_9 = arith.constant 0 : index
    %c0_10 = arith.constant 0 : index
    %11 = vector.load %arg6[%c0_9, %c0_10] : memref<1x128xf32, #tpu.memory_space<vmem>>, vector<1x128xf32>
    %12 = vector.broadcast %11 : vector<1x128xf32> to vector<16x128xf32>
    %13 = arith.addf %10, %12 : vector<16x128xf32>
    %14 = vector.extract_strided_slice %13 {offsets = [0, 0], sizes = [16, 4], strides = [1, 1]} : vector<16x128xf32> to vector<16x4xf32>
    %c0_11 = arith.constant 0 : index
    %c0_12 = arith.constant 0 : index
    %15 = vector.load %arg12[%c0_11, %c0_12] : memref<16x4xf32, #tpu.memory_space<vmem>>, vector<16x4xf32>
    tpu.vector_store %arg12[%c0_11, %c0_12], %14 {strides = array<i32>} : memref<16x4xf32, #tpu.memory_space<vmem>>, vector<16x4xf32>,
    %16 = vector.extract_strided_slice %13 {offsets = [0, 0], sizes = [16, 8], strides = [1, 1]} : vector<16x128xf32> to vector<16x8xf32>
    %17 = vector.extract_strided_slice %13 {offsets = [0, 2], sizes = [16, 8], strides = [1, 1]} : vector<16x128xf32> to vector<16x8xf32>
    %c0_13 = arith.constant 0 : index
    %c0_14 = arith.constant 0 : index
    %18 = vector.load %arg2[%c0_13, %c0_14] : memref<16x8xf32, #tpu.memory_space<vmem>>, vector<16x8xf32>
    %cst_15 = arith.constant 5.000000e-01 : f32
    %19 = vector.broadcast %cst_15 : f32 to vector<16x8xf32>
    %20 = arith.mulf %19, %17 : vector<16x8xf32>
    %21 = math.exp %20 : vector<16x8xf32>
    %22 = arith.mulf %18, %21 : vector<16x8xf32>
    %23 = arith.addf %16, %22 : vector<16x8xf32>
    %c0_16 = arith.constant 0 : index
    %c0_17 = arith.constant 0 : index
    %24 = vector.load %arg7[%c0_16, %c0_17] : memref<8x256xf32, #tpu.memory_space<vmem>>, vector<8x256xf32>
    %cst_18 = arith.constant dense<0.000000e+00> : vector<16x256xf32>
    %25 = tpu.matmul %23, %24, %cst_18 {dimension_numbers = #tpu.dot_dimension_numbers<[1], [0], [0], [1], [0, 0, 1, 1], [], []>} : vector<16x8xf32>, vector<8x256xf32>, vector<16x256xf32> -> vector<16x256xf32>
    %c0_19 = arith.constant 0 : index
    %c0_20 = arith.constant 0 : index
    %26 = vector.load %arg8[%c0_19, %c0_20] : memref<1x256xf32, #tpu.memory_space<vmem>>, vector<1x256xf32>
    %27 = vector.broadcast %26 : vector<1x256xf32> to vector<16x256xf32>
    %28 = arith.addf %25, %27 : vector<16x256xf32>
    %cst_21 = arith.constant 0.000000e+00 : f32
    %29 = vector.broadcast %cst_21 : f32 to vector<16x256xf32>
    %30 = arith.maximumf %28, %29 : vector<16x256xf32>
    %31 = arith.truncf %30 : vector<16x256xf32> to vector<16x256xbf16>
    %c0_22 = arith.constant 0 : index
    %c0_23 = arith.constant 0 : index
    %32 = vector.load %arg9[%c0_22, %c0_23] : memref<256x896xbf16, #tpu.memory_space<vmem>>, vector<256x896xbf16>
    %cst_24 = arith.constant dense<0.000000e+00> : vector<16x896xf32>
    %33 = tpu.matmul %31, %32, %cst_24 {dimension_numbers = #tpu.dot_dimension_numbers<[1], [0], [0], [1], [0, 0, 1, 1], [], []>} : vector<16x256xbf16>, vector<256x896xbf16>, vector<16x896xf32> -> vector<16x896xf32>
    %c0_25 = arith.constant 0 : index
    %c0_26 = arith.constant 0 : index
    %34 = vector.load %arg10[%c0_25, %c0_26] : memref<1x896xf32, #tpu.memory_space<vmem>>, vector<1x896xf32>
    %35 = vector.broadcast %34 : vector<1x896xf32> to vector<16x896xf32>
    %36 = arith.addf %33, %35 : vector<16x896xf32>
    %cst_27 = arith.constant 0.000000e+00 : f32
    %37 = vector.broadcast %cst_27 : f32 to vector<16x896xf32>
    %38 = arith.subf %37, %36 : vector<16x896xf32>
    %39 = math.exp %38 : vector<16x896xf32>
    %cst_28 = arith.constant 1.000000e+00 : f32
    %40 = vector.broadcast %cst_28 : f32 to vector<16x896xf32>
    %41 = arith.addf %40, %39 : vector<16x896xf32>
    %42 = tpu.reciprocal %41 {approx = true} : vector<16x896xf32> -> vector<16x896xf32>
    %43 = arith.truncf %42 : vector<16x896xf32> to vector<16x896xbf16>
    %c0_29 = arith.constant 0 : index
    %c0_30 = arith.constant 0 : index
    %44 = vector.load %arg11[%c0_29, %c0_30] : memref<16x896xbf16, #tpu.memory_space<vmem>>, vector<16x896xbf16>
    tpu.vector_store %arg11[%c0_29, %c0_30], %43 {strides = array<i32>} : memref<16x896xbf16, #tpu.memory_space<vmem>>, vector<16x896xbf16>,
    return
  }
  func.func @transform_0(%arg0: i32) -> (i32, i32) {
    %c0_i32 = arith.constant 0 : i32
    %c0_i32_0 = arith.constant 0 : i32
    return %arg0, %c0_i32 : i32, i32
  }
  func.func @transform_1(%arg0: i32) -> (i32, i32) {
    %c0_i32 = arith.constant 0 : i32
    %c0_i32_0 = arith.constant 0 : i32
    return %arg0, %c0_i32 : i32, i32
  }
  func.func @transform_2(%arg0: i32) -> (i32, i32) {
    %c0_i32 = arith.constant 0 : i32
    %c0_i32_0 = arith.constant 0 : i32
    %c0_i32_1 = arith.constant 0 : i32
    return %c0_i32, %c0_i32_0 : i32, i32
  }
  func.func @transform_3(%arg0: i32) -> (i32, i32) {
    %c0_i32 = arith.constant 0 : i32
    %c0_i32_0 = arith.constant 0 : i32
    %c0_i32_1 = arith.constant 0 : i32
    return %c0_i32, %c0_i32_0 : i32, i32
  }
  func.func @transform_4(%arg0: i32) -> (i32, i32) {
    %c0_i32 = arith.constant 0 : i32
    %c0_i32_0 = arith.constant 0 : i32
    %c0_i32_1 = arith.constant 0 : i32
    return %c0_i32, %c0_i32_0 : i32, i32
  }
  func.func @transform_5(%arg0: i32) -> (i32, i32) {
    %c0_i32 = arith.constant 0 : i32
    %c0_i32_0 = arith.constant 0 : i32
    %c0_i32_1 = arith.constant 0 : i32
    return %c0_i32, %c0_i32_0 : i32, i32
  }
  func.func @transform_6(%arg0: i32) -> (i32, i32) {
    %c0_i32 = arith.constant 0 : i32
    %c0_i32_0 = arith.constant 0 : i32
    %c0_i32_1 = arith.constant 0 : i32
    return %c0_i32, %c0_i32_0 : i32, i32
  }
  func.func @transform_7(%arg0: i32) -> (i32, i32) {
    %c0_i32 = arith.constant 0 : i32
    %c0_i32_0 = arith.constant 0 : i32
    %c0_i32_1 = arith.constant 0 : i32
    return %c0_i32, %c0_i32_0 : i32, i32
  }
  func.func @transform_8(%arg0: i32) -> (i32, i32) {
    %c0_i32 = arith.constant 0 : i32
    %c0_i32_0 = arith.constant 0 : i32
    %c0_i32_1 = arith.constant 0 : i32
    return %c0_i32, %c0_i32_0 : i32, i32
  }
  func.func @transform_9(%arg0: i32) -> (i32, i32) {
    %c0_i32 = arith.constant 0 : i32
    %c0_i32_0 = arith.constant 0 : i32
    %c0_i32_1 = arith.constant 0 : i32
    return %c0_i32, %c0_i32_0 : i32, i32
  }
  func.func @transform_10(%arg0: i32) -> (i32, i32) {
    %c0_i32 = arith.constant 0 : i32
    %c0_i32_0 = arith.constant 0 : i32
    return %arg0, %c0_i32 : i32, i32
  }
  func.func @transform_11(%arg0: i32) -> (i32, i32) {
    %c0_i32 = arith.constant 0 : i32
    %c0_i32_0 = arith.constant 0 : i32
    return %arg0, %c0_i32 : i32, i32
  }
}

</mosaic_0001>

<llo_original>
// kernel: tpu_custom_call.1
$region0: #{tpu_custom_call.1}
  #allocation0 [shape = 'u32[]', space=smem, size = 0x4, offset = 0x4, fixed_abs, tag = 'smem constant byte address 0x4 - core index']
  #allocation1 [shape = 'u32[72,128]{1,0:T(1,128)}', space=vmem, size = 0x9000, scoped, tag = 'internal scratch']
  %s0 = inlined_call_operand.hbm [shape: bf16[16,896], index: 0, kind: input, shape index: {}]
  %s1 = inlined_call_operand.vmem [shape: f32[16,8], index: 1, kind: input, shape index: {}]
  %s2 = inlined_call_operand.hbm [shape: bf16[896,256], index: 2, kind: input, shape index: {}]
  %s3 = inlined_call_operand.vmem [shape: f32[1,256], index: 3, kind: input, shape index: {}]
  %s4 = inlined_call_operand.hbm [shape: bf16[256,128], index: 4, kind: input, shape index: {}]
  %s5 = inlined_call_operand.vmem [shape: f32[1,128], index: 5, kind: input, shape index: {}]
  %s6 = inlined_call_operand.vmem [shape: f32[8,256], index: 6, kind: input, shape index: {}]
  %s7 = inlined_call_operand.vmem [shape: f32[1,256], index: 7, kind: input, shape index: {}]
  %s8 = inlined_call_operand.hbm [shape: bf16[256,896], index: 8, kind: input, shape index: {}]
  %s9 = inlined_call_operand.vmem [shape: f32[1,896], index: 9, kind: input, shape index: {}]
  %s10 = inlined_call_operand.hbm [shape: bf16[16,896], index: 10, kind: output, shape index: {0}]
  %s11 = inlined_call_operand.vmem [shape: f32[16,4], index: 11, kind: output, shape index: {1}]
  %12 = xla_tuple %s10, %s11
  %s13 = sld [smem:[#allocation0]]
  $region74: #{tpu_custom_call.1} parent=0
    _
  %s15 = ssub.s32 1, %s13
  %s16 = scalar_select 0, %s15, %s13
  $region1: #{tpu_custom_call.1} parent=0
    #allocation2 [shape = 'u8[28672]{0}', space=vmem, size = 0x7000, scoped, tag = 'input window, operand 0, single buffered']
    #allocation3 [shape = 's32[1]{0}', space=sflag, size = 0x4, scoped, tag = 'scoped memory for tpu_custom_call.1']
    #allocation4 [shape = 's32[1]{0}', space=sflag, size = 0x4, scoped, tag = 'scoped memory for tpu_custom_call.1']
    #allocation5 [shape = 'u8[458752]{0}', space=vmem, size = 0x70000, scoped, tag = 'input window, operand 2, single buffered']
    #allocation6 [shape = 's32[1]{0}', space=sflag, size = 0x4, scoped, tag = 'scoped memory for tpu_custom_call.1']
    #allocation7 [shape = 'u8[65536]{0}', space=vmem, size = 0x10000, scoped, tag = 'input window, operand 4, single buffered']
    #allocation8 [shape = 'u8[458752]{0}', space=vmem, size = 0x70000, scoped, tag = 'input window, operand 8, single buffered']
    #allocation9 [shape = 's32[1]{0}', space=sflag, size = 0x4, scoped, tag = 'scoped memory for tpu_custom_call.1']
    #allocation10 [shape = 'u8[28672]{0}', space=vmem, size = 0x7000, scoped, tag = 'output window, operand 0, single buffered']
    %17 = vsyncpa [#allocation3], 0
    %18 = vsyncpa [#allocation6], 0
    %19 = vsyncpa [#allocation9], 0
    %20 = vsyncpa [#allocation4], 0
    // Predicated region
    $region2: #{tpu_custom_call.1} parent=1 // pred_check
      _
    $region3: #{tpu_custom_call.1} parent=1 // pred_check_branch
      %22 = sbr.rel (0) target = $region5
    $region4: #{tpu_custom_call.1} parent=1 // pred_region
      %24 = vsyncadd [#allocation3], 0
      %s25 = sshll.u32 %s0, 4
      %s26 = int_to_ptr.hbm [resolvable:$true] %s25
      %s27 = sshll.u32 [#allocation2], 4
      %s28 = int_to_ptr.vmem [resolvable:$true] %s27
      %33 = dma.hbm_to_vmem [thread:$0]  %s26, 896, %s28, [#allocation3], 448, 448, 28
    $region5: #{tpu_custom_call.1} parent=1 // pred_fallthru
      _
    // Predicated region
    $region6: #{tpu_custom_call.1} parent=1 // pred_check
      _
    $region7: #{tpu_custom_call.1} parent=1 // pred_check_branch
      %35 = sbr.rel (0) target = $region9
    $region8: #{tpu_custom_call.1} parent=1 // pred_region
      _
    $region9: #{tpu_custom_call.1} parent=1 // pred_fallthru
      _
    // Predicated region
    $region10: #{tpu_custom_call.1} parent=1 // pred_check
      _
    $region11: #{tpu_custom_call.1} parent=1 // pred_check_branch
      %37 = sbr.rel (0) target = $region13
    $region12: #{tpu_custom_call.1} parent=1 // pred_region
      %39 = vsyncadd [#allocation6], 0
      %s40 = sshll.u32 %s2, 4
      %s41 = int_to_ptr.hbm [resolvable:$true] %s40
      %s42 = sshll.u32 [#allocation5], 4
      %s43 = int_to_ptr.vmem [resolvable:$true] %s42
      %48 = dma.hbm_to_vmem [thread:$0]  %s41, 14336, %s43, [#allocation6], 128, 128, 8
    $region13: #{tpu_custom_call.1} parent=1 // pred_fallthru
      _
    // Predicated region
    $region14: #{tpu_custom_call.1} parent=1 // pred_check
      _
    $region15: #{tpu_custom_call.1} parent=1 // pred_check_branch
      %50 = sbr.rel (0) target = $region17
    $region16: #{tpu_custom_call.1} parent=1 // pred_region
      _
    $region17: #{tpu_custom_call.1} parent=1 // pred_fallthru
      _
    // Predicated region
    $region18: #{tpu_custom_call.1} parent=1 // pred_check
      _
    $region19: #{tpu_custom_call.1} parent=1 // pred_check_branch
      %52 = sbr.rel (0) target = $region21
    $region20: #{tpu_custom_call.1} parent=1 // pred_region
      %54 = vsyncadd [#allocation6], 0
      %s55 = sshll.u32 %s4, 4
      %s56 = int_to_ptr.hbm [resolvable:$true] %s55
      %s57 = sshll.u32 [#allocation7], 4
      %s58 = int_to_ptr.vmem [resolvable:$true] %s57
      %63 = dma.hbm_to_vmem [thread:$0]  %s56, 2048, %s58, [#allocation6], 64, 64, 4
    $region21: #{tpu_custom_call.1} parent=1 // pred_fallthru
      _
    // Predicated region
    $region22: #{tpu_custom_call.1} parent=1 // pred_check
      _
    $region23: #{tpu_custom_call.1} parent=1 // pred_check_branch
      %65 = sbr.rel (0) target = $region25
    $region24: #{tpu_custom_call.1} parent=1 // pred_region
      _
    $region25: #{tpu_custom_call.1} parent=1 // pred_fallthru
      _
    // Predicated region
    $region26: #{tpu_custom_call.1} parent=1 // pred_check
      _
    $region27: #{tpu_custom_call.1} parent=1 // pred_check_branch
      %67 = sbr.rel (0) target = $region29
    $region28: #{tpu_custom_call.1} parent=1 // pred_region
      _
    $region29: #{tpu_custom_call.1} parent=1 // pred_fallthru
      _
    // Predicated region
    $region30: #{tpu_custom_call.1} parent=1 // pred_check
      _
    $region31: #{tpu_custom_call.1} parent=1 // pred_check_branch
      %69 = sbr.rel (0) target = $region33
    $region32: #{tpu_custom_call.1} parent=1 // pred_region
      _
    $region33: #{tpu_custom_call.1} parent=1 // pred_fallthru
      _
    // Predicated region
    $region34: #{tpu_custom_call.1} parent=1 // pred_check
      _
    $region35: #{tpu_custom_call.1} parent=1 // pred_check_branch
      %71 = sbr.rel (0) target = $region37
    $region36: #{tpu_custom_call.1} parent=1 // pred_region
      %73 = vsyncadd [#allocation9], 0
      %s74 = sshll.u32 %s8, 4
      %s75 = int_to_ptr.hbm [resolvable:$true] %s74
      %s76 = sshll.u32 [#allocation8], 4
      %s77 = int_to_ptr.vmem [resolvable:$true] %s76
      %82 = dma.hbm_to_vmem [thread:$0]  %s75, 14336, %s77, [#allocation9], 448, 448, 28
    $region37: #{tpu_custom_call.1} parent=1 // pred_fallthru
      _
    // Predicated region
    $region38: #{tpu_custom_call.1} parent=1 // pred_check
      _
    $region39: #{tpu_custom_call.1} parent=1 // pred_check_branch
      %84 = sbr.rel (0) target = $region41
    $region40: #{tpu_custom_call.1} parent=1 // pred_region
      _
    $region41: #{tpu_custom_call.1} parent=1 // pred_fallthru
      _
    // Predicated region
    $region42: #{tpu_custom_call.1} parent=1 // pred_check
      _
    $region43: #{tpu_custom_call.1} parent=1 // pred_check_branch
      %86 = sbr.rel (0) target = $region45
    $region44: #{tpu_custom_call.1} parent=1 // pred_region
      %88 = dma.done [#allocation3], 896
    $region45: #{tpu_custom_call.1} parent=1 // pred_fallthru
      _
    // Predicated region
    $region46: #{tpu_custom_call.1} parent=1 // pred_check
      _
    $region47: #{tpu_custom_call.1} parent=1 // pred_check_branch
      %90 = sbr.rel (0) target = $region49
    $region48: #{tpu_custom_call.1} parent=1 // pred_region
      %92 = dma.done [#allocation6], 14336
    $region49: #{tpu_custom_call.1} parent=1 // pred_fallthru
      _
    // Predicated region
    $region50: #{tpu_custom_call.1} parent=1 // pred_check
      _
    $region51: #{tpu_custom_call.1} parent=1 // pred_check_branch
      %94 = sbr.rel (0) target = $region53
    $region52: #{tpu_custom_call.1} parent=1 // pred_region
      %96 = dma.done [#allocation6], 2048
    $region53: #{tpu_custom_call.1} parent=1 // pred_fallthru
      _
    // Predicated region
    $region54: #{tpu_custom_call.1} parent=1 // pred_check
      _
    $region55: #{tpu_custom_call.1} parent=1 // pred_check_branch
      %98 = sbr.rel (0) target = $region57
    $region56: #{tpu_custom_call.1} parent=1 // pred_region
      %100 = dma.done [#allocation9], 14336
    $region57: #{tpu_custom_call.1} parent=1 // pred_fallthru
      _
    %v101 = vld [vmem:[#allocation2] sm:$0xff]
    %v102 = vld [vmem:[#allocation2 + $0x8] sm:$0xff]
    %v103 = vld [vmem:[#allocation2 + $0x10] sm:$0xff]
    %v104 = vld [vmem:[#allocation2 + $0x18] sm:$0xf]
    %v105 = vld [vmem:[#allocation2 + $0x1c] sm:$0xff]
    %v106 = vld [vmem:[#allocation2 + $0x24] sm:$0xff]
    %v107 = vld [vmem:[#allocation2 + $0x2c] sm:$0xff]
    %v108 = vld [vmem:[#allocation2 + $0x34] sm:$0xf]
    %v109 = vld [vmem:[#allocation5] sm:$0xff]
    %v110 = vld [vmem:[#allocation5 + $0x8] sm:$0xff]
    %v111 = vld [vmem:[#allocation5 + $0x10] sm:$0xff]
    %v112 = vld [vmem:[#allocation5 + $0x18] sm:$0xff]
    %v113 = vld [vmem:[#allocation5 + $0x20] sm:$0xff]
    %v114 = vld [vmem:[#allocation5 + $0x28] sm:$0xff]
    %v115 = vld [vmem:[#allocation5 + $0x30] sm:$0xff]
    %v116 = vld [vmem:[#allocation5 + $0x38] sm:$0xff]
    %v117 = vld [vmem:[#allocation5 + $0x40] sm:$0xff]
    %v118 = vld [vmem:[#allocation5 + $0x48] sm:$0xff]
    %v119 = vld [vmem:[#allocation5 + $0x50] sm:$0xff]
    %v120 = vld [vmem:[#allocation5 + $0x58] sm:$0xff]
    %v121 = vld [vmem:[#allocation5 + $0x60] sm:$0xff]
    %v122 = vld [vmem:[#allocation5 + $0x68] sm:$0xff]
    %v123 = vld [vmem:[#allocation5 + $0x70] sm:$0xff]
    %v124 = vld [vmem:[#allocation5 + $0x78] sm:$0xff]
    %v125 = vld [vmem:[#allocation5 + $0x80] sm:$0xff]
    %v126 = vld [vmem:[#allocation5 + $0x88] sm:$0xff]
    %v127 = vld [vmem:[#allocation5 + $0x90] sm:$0xff]
    %v128 = vld [vmem:[#allocation5 + $0x98] sm:$0xff]
    %v129 = vld [vmem:[#allocation5 + $0xa0] sm:$0xff]
    %v130 = vld [vmem:[#allocation5 + $0xa8] sm:$0xff]
    %v131 = vld [vmem:[#allocation5 + $0xb0] sm:$0xff]
    %v132 = vld [vmem:[#allocation5 + $0xb8] sm:$0xff]
    %v133 = vld [vmem:[#allocation5 + $0xc0] sm:$0xff]
    %v134 = vld [vmem:[#allocation5 + $0xc8] sm:$0xff]
    %v135 = vld [vmem:[#allocation5 + $0xd0] sm:$0xff]
    %v136 = vld [vmem:[#allocation5 + $0xd8] sm:$0xff]
    %v137 = vld [vmem:[#allocation5 + $0xe0] sm:$0xff]
    %v138 = vld [vmem:[#allocation5 + $0xe8] sm:$0xff]
    %v139 = vld [vmem:[#allocation5 + $0xf0] sm:$0xff]
    %v140 = vld [vmem:[#allocation5 + $0xf8] sm:$0xff]
    %v141 = vld [vmem:[#allocation5 + $0x100] sm:$0xff]
    %v142 = vld [vmem:[#allocation5 + $0x108] sm:$0xff]
    %v143 = vld [vmem:[#allocation5 + $0x110] sm:$0xff]
    %v144 = vld [vmem:[#allocation5 + $0x118] sm:$0xff]
    %v145 = vld [vmem:[#allocation5 + $0x120] sm:$0xff]
    %v146 = vld [vmem:[#allocation5 + $0x128] sm:$0xff]
    %v147 = vld [vmem:[#allocation5 + $0x130] sm:$0xff]
    %v148 = vld [vmem:[#allocation5 + $0x138] sm:$0xff]
    %v149 = vld [vmem:[#allocation5 + $0x140] sm:$0xff]
    %v150 = vld [vmem:[#allocation5 + $0x148] sm:$0xff]
    %v151 = vld [vmem:[#allocation5 + $0x150] sm:$0xff]
    %v152 = vld [vmem:[#allocation5 + $0x158] sm:$0xff]
    %v153 = vld [vmem:[#allocation5 + $0x160] sm:$0xff]
    %v154 = vld [vmem:[#allocation5 + $0x168] sm:$0xff]
    %v155 = vld [vmem:[#allocation5 + $0x170] sm:$0xff]
    %v156 = vld [vmem:[#allocation5 + $0x178] sm:$0xff]
    %v157 = vld [vmem:[#allocation5 + $0x180] sm:$0xff]
    %v158 = vld [vmem:[#allocation5 + $0x188] sm:$0xff]
    %v159 = vld [vmem:[#allocation5 + $0x190] sm:$0xff]
    %v160 = vld [vmem:[#allocation5 + $0x198] sm:$0xff]
    %v161 = vld [vmem:[#allocation5 + $0x1a0] sm:$0xff]
    %v162 = vld [vmem:[#allocation5 + $0x1a8] sm:$0xff]
    %v163 = vld [vmem:[#allocation5 + $0x1b0] sm:$0xff]
    %v164 = vld [vmem:[#allocation5 + $0x1b8] sm:$0xff]
    %v165 = vld [vmem:[#allocation5 + $0x1c0] sm:$0xff]
    %v166 = vld [vmem:[#allocation5 + $0x1c8] sm:$0xff]
    %v167 = vld [vmem:[#allocation5 + $0x1d0] sm:$0xff]
    %v168 = vld [vmem:[#allocation5 + $0x1d8] sm:$0xff]
    %v169 = vld [vmem:[#allocation5 + $0x1e0] sm:$0xff]
    %v170 = vld [vmem:[#allocation5 + $0x1e8] sm:$0xff]
    %v171 = vld [vmem:[#allocation5 + $0x1f0] sm:$0xff]
    %v172 = vld [vmem:[#allocation5 + $0x1f8] sm:$0xff]
    %v173 = vld [vmem:[#allocation5 + $0x200] sm:$0xff]
    %v174 = vld [vmem:[#allocation5 + $0x208] sm:$0xff]
    %v175 = vld [vmem:[#allocation5 + $0x210] sm:$0xff]
    %v176 = vld [vmem:[#allocation5 + $0x218] sm:$0xff]
    %v177 = vld [vmem:[#allocation5 + $0x220] sm:$0xff]
    %v178 = vld [vmem:[#allocation5 + $0x228] sm:$0xff]
    %v179 = vld [vmem:[#allocation5 + $0x230] sm:$0xff]
    %v180 = vld [vmem:[#allocation5 + $0x238] sm:$0xff]
    %v181 = vld [vmem:[#allocation5 + $0x240] sm:$0xff]
    %v182 = vld [vmem:[#allocation5 + $0x248] sm:$0xff]
    %v183 = vld [vmem:[#allocation5 + $0x250] sm:$0xff]
    %v184 = vld [vmem:[#allocation5 + $0x258] sm:$0xff]
    %v185 = vld [vmem:[#allocation5 + $0x260] sm:$0xff]
    %v186 = vld [vmem:[#allocation5 + $0x268] sm:$0xff]
    %v187 = vld [vmem:[#allocation5 + $0x270] sm:$0xff]
    %v188 = vld [vmem:[#allocation5 + $0x278] sm:$0xff]
    %v189 = vld [vmem:[#allocation5 + $0x280] sm:$0xff]
    %v190 = vld [vmem:[#allocation5 + $0x288] sm:$0xff]
    %v191 = vld [vmem:[#allocation5 + $0x290] sm:$0xff]
    %v192 = vld [vmem:[#allocation5 + $0x298] sm:$0xff]
    %v193 = vld [vmem:[#allocation5 + $0x2a0] sm:$0xff]
    %v194 = vld [vmem:[#allocation5 + $0x2a8] sm:$0xff]
    %v195 = vld [vmem:[#allocation5 + $0x2b0] sm:$0xff]
    %v196 = vld [vmem:[#allocation5 + $0x2b8] sm:$0xff]
    %v197 = vld [vmem:[#allocation5 + $0x2c0] sm:$0xff]
    %v198 = vld [vmem:[#allocation5 + $0x2c8] sm:$0xff]
    %v199 = vld [vmem:[#allocation5 + $0x2d0] sm:$0xff]
    %v200 = vld [vmem:[#allocation5 + $0x2d8] sm:$0xff]
    %v201 = vld [vmem:[#allocation5 + $0x2e0] sm:$0xff]
    %v202 = vld [vmem:[#allocation5 + $0x2e8] sm:$0xff]
    %v203 = vld [vmem:[#allocation5 + $0x2f0] sm:$0xff]
    %v204 = vld [vmem:[#allocation5 + $0x2f8] sm:$0xff]
    %v205 = vld [vmem:[#allocation5 + $0x300] sm:$0xff]
    %v206 = vld [vmem:[#allocation5 + $0x308] sm:$0xff]
    %v207 = vld [vmem:[#allocation5 + $0x310] sm:$0xff]
    %v208 = vld [vmem:[#allocation5 + $0x318] sm:$0xff]
    %v209 = vld [vmem:[#allocation5 + $0x320] sm:$0xff]
    %v210 = vld [vmem:[#allocation5 + $0x328] sm:$0xff]
    %v211 = vld [vmem:[#allocation5 + $0x330] sm:$0xff]
    %v212 = vld [vmem:[#allocation5 + $0x338] sm:$0xff]
    %v213 = vld [vmem:[#allocation5 + $0x340] sm:$0xff]
    %v214 = vld [vmem:[#allocation5 + $0x348] sm:$0xff]
    %v215 = vld [vmem:[#allocation5 + $0x350] sm:$0xff]
    %v216 = vld [vmem:[#allocation5 + $0x358] sm:$0xff]
    %v217 = vld [vmem:[#allocation5 + $0x360] sm:$0xff]
    %v218 = vld [vmem:[#allocation5 + $0x368] sm:$0xff]
    %v219 = vld [vmem:[#allocation5 + $0x370] sm:$0xff]
    %v220 = vld [vmem:[#allocation5 + $0x378] sm:$0xff]
    %v221 = vld [vmem:[%s3] sm:$0x3]
    %v223 = vperm.slane %v221, 0
    %v224 = vperm.slane %v221, 1
    %v235 = vunpack.c.l.b16 %v101
    %v236 = vunpack.c.h.b16 %v101
    %v237 = vunpack.c.l.b16 %v102
    %v238 = vunpack.c.h.b16 %v102
    %v239 = vunpack.c.l.b16 %v103
    %v240 = vunpack.c.h.b16 %v103
    %v241 = vunpack.c.l.b16 %v104
    %v242 = vunpack.c.l.b16 %v105
    %v243 = vunpack.c.h.b16 %v105
    %v244 = vunpack.c.l.b16 %v106
    %v245 = vunpack.c.h.b16 %v106
    %v246 = vunpack.c.l.b16 %v107
    %v247 = vunpack.c.h.b16 %v107
    %v248 = vunpack.c.l.b16 %v108
    %v249 = vpack.c.b16 %v242, %v235
    %v250 = vpack.c.b16 %v243, %v236
    %v251 = vpack.c.b16 %v244, %v237
    %v252 = vpack.c.b16 %v245, %v238
    %v253 = vpack.c.b16 %v246, %v239
    %v254 = vpack.c.b16 %v247, %v240
    %v255 = vpack.c.b16 %v248, %v241
    %v375 = vunpack.c.l.b16 %v109
    %v376 = vunpack.c.h.b16 %v109
    %v377 = vunpack.c.l.b16 %v110
    %v378 = vunpack.c.h.b16 %v110
    %v379 = vunpack.c.l.b16 %v111
    %v380 = vunpack.c.h.b16 %v111
    %v381 = vunpack.c.l.b16 %v112
    %v382 = vunpack.c.h.b16 %v112
    %v383 = vunpack.c.l.b16 %v113
    %v384 = vunpack.c.h.b16 %v113
    %v385 = vunpack.c.l.b16 %v114
    %v386 = vunpack.c.h.b16 %v114
    %v387 = vunpack.c.l.b16 %v115
    %v388 = vunpack.c.h.b16 %v115
    %v389 = vunpack.c.l.b16 %v116
    %v390 = vunpack.c.h.b16 %v116
    %v391 = vunpack.c.l.b16 %v117
    %v392 = vunpack.c.h.b16 %v117
    %v393 = vunpack.c.l.b16 %v118
    %v394 = vunpack.c.h.b16 %v118
    %v395 = vunpack.c.l.b16 %v119
    %v396 = vunpack.c.h.b16 %v119
    %v397 = vunpack.c.l.b16 %v120
    %v398 = vunpack.c.h.b16 %v120
    %v399 = vunpack.c.l.b16 %v121
    %v400 = vunpack.c.h.b16 %v121
    %v401 = vunpack.c.l.b16 %v122
    %v402 = vunpack.c.h.b16 %v122
    %v403 = vunpack.c.l.b16 %v123
    %v404 = vunpack.c.h.b16 %v123
    %v405 = vunpack.c.l.b16 %v124
    %v406 = vunpack.c.h.b16 %v124
    %v407 = vunpack.c.l.b16 %v125
    %v408 = vunpack.c.h.b16 %v125
    %v409 = vunpack.c.l.b16 %v126
    %v410 = vunpack.c.h.b16 %v126
    %v411 = vunpack.c.l.b16 %v127
    %v412 = vunpack.c.h.b16 %v127
    %v413 = vunpack.c.l.b16 %v128
    %v414 = vunpack.c.h.b16 %v128
    %v415 = vunpack.c.l.b16 %v129
    %v416 = vunpack.c.h.b16 %v129
    %v417 = vunpack.c.l.b16 %v130
    %v418 = vunpack.c.h.b16 %v130
    %v419 = vunpack.c.l.b16 %v131
    %v420 = vunpack.c.h.b16 %v131
    %v421 = vunpack.c.l.b16 %v132
    %v422 = vunpack.c.h.b16 %v132
    %v423 = vunpack.c.l.b16 %v133
    %v424 = vunpack.c.h.b16 %v133
    %v425 = vunpack.c.l.b16 %v134
    %v426 = vunpack.c.h.b16 %v134
    %v427 = vunpack.c.l.b16 %v135
    %v428 = vunpack.c.h.b16 %v135
    %v429 = vunpack.c.l.b16 %v136
    %v430 = vunpack.c.h.b16 %v136
    %v431 = vunpack.c.l.b16 %v137
    %v432 = vunpack.c.h.b16 %v137
    %v433 = vunpack.c.l.b16 %v138
    %v434 = vunpack.c.h.b16 %v138
    %v435 = vunpack.c.l.b16 %v139
    %v436 = vunpack.c.h.b16 %v139
    %v437 = vunpack.c.l.b16 %v140
    %v438 = vunpack.c.h.b16 %v140
    %v439 = vunpack.c.l.b16 %v141
    %v440 = vunpack.c.h.b16 %v141
    %v441 = vunpack.c.l.b16 %v142
    %v442 = vunpack.c.h.b16 %v142
    %v443 = vunpack.c.l.b16 %v143
    %v444 = vunpack.c.h.b16 %v143
    %v445 = vunpack.c.l.b16 %v144
    %v446 = vunpack.c.h.b16 %v144
    %v447 = vunpack.c.l.b16 %v145
    %v448 = vunpack.c.h.b16 %v145
    %v449 = vunpack.c.l.b16 %v146
    %v450 = vunpack.c.h.b16 %v146
    %v451 = vunpack.c.l.b16 %v147
    %v452 = vunpack.c.h.b16 %v147
    %v453 = vunpack.c.l.b16 %v148
    %v454 = vunpack.c.h.b16 %v148
    %v455 = vunpack.c.l.b16 %v149
    %v456 = vunpack.c.h.b16 %v149
    %v457 = vunpack.c.l.b16 %v150
    %v458 = vunpack.c.h.b16 %v150
    %v459 = vunpack.c.l.b16 %v151
    %v460 = vunpack.c.h.b16 %v151
    %v461 = vunpack.c.l.b16 %v152
    %v462 = vunpack.c.h.b16 %v152
    %v463 = vunpack.c.l.b16 %v153
    %v464 = vunpack.c.h.b16 %v153
    %v465 = vunpack.c.l.b16 %v154
    %v466 = vunpack.c.h.b16 %v154
    %v467 = vunpack.c.l.b16 %v155
    %v468 = vunpack.c.h.b16 %v155
    %v469 = vunpack.c.l.b16 %v156
    %v470 = vunpack.c.h.b16 %v156
    %v471 = vunpack.c.l.b16 %v157
    %v472 = vunpack.c.h.b16 %v157
    %v473 = vunpack.c.l.b16 %v158
    %v474 = vunpack.c.h.b16 %v158
    %v475 = vunpack.c.l.b16 %v159
    %v476 = vunpack.c.h.b16 %v159
    %v477 = vunpack.c.l.b16 %v160
    %v478 = vunpack.c.h.b16 %v160
    %v479 = vunpack.c.l.b16 %v161
    %v480 = vunpack.c.h.b16 %v161
    %v481 = vunpack.c.l.b16 %v162
    %v482 = vunpack.c.h.b16 %v162
    %v483 = vunpack.c.l.b16 %v163
    %v484 = vunpack.c.h.b16 %v163
    %v485 = vunpack.c.l.b16 %v164
    %v486 = vunpack.c.h.b16 %v164
    %v487 = vunpack.c.l.b16 %v165
    %v488 = vunpack.c.h.b16 %v165
    %v489 = vunpack.c.l.b16 %v166
    %v490 = vunpack.c.h.b16 %v166
    %v491 = vunpack.c.l.b16 %v167
    %v492 = vunpack.c.h.b16 %v167
    %v493 = vunpack.c.l.b16 %v168
    %v494 = vunpack.c.h.b16 %v168
    %v495 = vunpack.c.l.b16 %v169
    %v496 = vunpack.c.h.b16 %v169
    %v497 = vunpack.c.l.b16 %v170
    %v498 = vunpack.c.h.b16 %v170
    %v499 = vunpack.c.l.b16 %v171
    %v500 = vunpack.c.h.b16 %v171
    %v501 = vunpack.c.l.b16 %v172
    %v502 = vunpack.c.h.b16 %v172
    %v503 = vunpack.c.l.b16 %v173
    %v504 = vunpack.c.h.b16 %v173
    %v505 = vunpack.c.l.b16 %v174
    %v506 = vunpack.c.h.b16 %v174
    %v507 = vunpack.c.l.b16 %v175
    %v508 = vunpack.c.h.b16 %v175
    %v509 = vunpack.c.l.b16 %v176
    %v510 = vunpack.c.h.b16 %v176
    %v511 = vunpack.c.l.b16 %v177
    %v512 = vunpack.c.h.b16 %v177
    %v513 = vunpack.c.l.b16 %v178
    %v514 = vunpack.c.h.b16 %v178
    %v515 = vunpack.c.l.b16 %v179
    %v516 = vunpack.c.h.b16 %v179
    %v517 = vunpack.c.l.b16 %v180
    %v518 = vunpack.c.h.b16 %v180
    %v519 = vunpack.c.l.b16 %v181
    %v520 = vunpack.c.h.b16 %v181
    %v521 = vunpack.c.l.b16 %v182
    %v522 = vunpack.c.h.b16 %v182
    %v523 = vunpack.c.l.b16 %v183
    %v524 = vunpack.c.h.b16 %v183
    %v525 = vunpack.c.l.b16 %v184
    %v526 = vunpack.c.h.b16 %v184
    %v527 = vunpack.c.l.b16 %v185
    %v528 = vunpack.c.h.b16 %v185
    %v529 = vunpack.c.l.b16 %v186
    %v530 = vunpack.c.h.b16 %v186
    %v531 = vunpack.c.l.b16 %v187
    %v532 = vunpack.c.h.b16 %v187
    %v533 = vunpack.c.l.b16 %v188
    %v534 = vunpack.c.h.b16 %v188
    %v535 = vunpack.c.l.b16 %v189
    %v536 = vunpack.c.h.b16 %v189
    %v537 = vunpack.c.l.b16 %v190
    %v538 = vunpack.c.h.b16 %v190
    %v539 = vunpack.c.l.b16 %v191
    %v540 = vunpack.c.h.b16 %v191
    %v541 = vunpack.c.l.b16 %v192
    %v542 = vunpack.c.h.b16 %v192
    %v543 = vunpack.c.l.b16 %v193
    %v544 = vunpack.c.h.b16 %v193
    %v545 = vunpack.c.l.b16 %v194
    %v546 = vunpack.c.h.b16 %v194
    %v547 = vunpack.c.l.b16 %v195
    %v548 = vunpack.c.h.b16 %v195
    %v549 = vunpack.c.l.b16 %v196
    %v550 = vunpack.c.h.b16 %v196
    %v551 = vunpack.c.l.b16 %v197
    %v552 = vunpack.c.h.b16 %v197
    %v553 = vunpack.c.l.b16 %v198
    %v554 = vunpack.c.h.b16 %v198
    %v555 = vunpack.c.l.b16 %v199
    %v556 = vunpack.c.h.b16 %v199
    %v557 = vunpack.c.l.b16 %v200
    %v558 = vunpack.c.h.b16 %v200
    %v559 = vunpack.c.l.b16 %v201
    %v560 = vunpack.c.h.b16 %v201
    %v561 = vunpack.c.l.b16 %v202
    %v562 = vunpack.c.h.b16 %v202
    %v563 = vunpack.c.l.b16 %v203
    %v564 = vunpack.c.h.b16 %v203
    %v565 = vunpack.c.l.b16 %v204
    %v566 = vunpack.c.h.b16 %v204
    %v567 = vunpack.c.l.b16 %v205
    %v568 = vunpack.c.h.b16 %v205
    %v569 = vunpack.c.l.b16 %v206
    %v570 = vunpack.c.h.b16 %v206
    %v571 = vunpack.c.l.b16 %v207
    %v572 = vunpack.c.h.b16 %v207
    %v573 = vunpack.c.l.b16 %v208
    %v574 = vunpack.c.h.b16 %v208
    %v575 = vunpack.c.l.b16 %v209
    %v576 = vunpack.c.h.b16 %v209
    %v577 = vunpack.c.l.b16 %v210
    %v578 = vunpack.c.h.b16 %v210
    %v579 = vunpack.c.l.b16 %v211
    %v580 = vunpack.c.h.b16 %v211
    %v581 = vunpack.c.l.b16 %v212
    %v582 = vunpack.c.h.b16 %v212
    %v583 = vunpack.c.l.b16 %v213
    %v584 = vunpack.c.h.b16 %v213
    %v585 = vunpack.c.l.b16 %v214
    %v586 = vunpack.c.h.b16 %v214
    %v587 = vunpack.c.l.b16 %v215
    %v588 = vunpack.c.h.b16 %v215
    %v589 = vunpack.c.l.b16 %v216
    %v590 = vunpack.c.h.b16 %v216
    %v591 = vunpack.c.l.b16 %v217
    %v592 = vunpack.c.h.b16 %v217
    %v593 = vunpack.c.l.b16 %v218
    %v594 = vunpack.c.h.b16 %v218
    %v595 = vunpack.c.l.b16 %v219
    %v596 = vunpack.c.h.b16 %v219
    %v597 = vunpack.c.l.b16 %v220
    %v598 = vunpack.c.h.b16 %v220
    %v599 = vpack.c.b16 %v377, %v375
    %v600 = vpack.c.b16 %v378, %v376
    %v601 = vpack.c.b16 %v381, %v379
    %v602 = vpack.c.b16 %v382, %v380
    %v603 = vpack.c.b16 %v385, %v383
    %v604 = vpack.c.b16 %v386, %v384
    %v605 = vpack.c.b16 %v389, %v387
    %v606 = vpack.c.b16 %v390, %v388
    %v607 = vpack.c.b16 %v393, %v391
    %v608 = vpack.c.b16 %v394, %v392
    %v609 = vpack.c.b16 %v397, %v395
    %v610 = vpack.c.b16 %v398, %v396
    %v611 = vpack.c.b16 %v401, %v399
    %v612 = vpack.c.b16 %v402, %v400
    %v613 = vpack.c.b16 %v405, %v403
    %v614 = vpack.c.b16 %v406, %v404
    %v615 = vpack.c.b16 %v409, %v407
    %v616 = vpack.c.b16 %v410, %v408
    %v617 = vpack.c.b16 %v413, %v411
    %v618 = vpack.c.b16 %v414, %v412
    %v619 = vpack.c.b16 %v417, %v415
    %v620 = vpack.c.b16 %v418, %v416
    %v621 = vpack.c.b16 %v421, %v419
    %v622 = vpack.c.b16 %v422, %v420
    %v623 = vpack.c.b16 %v425, %v423
    %v624 = vpack.c.b16 %v426, %v424
    %v625 = vpack.c.b16 %v429, %v427
    %v626 = vpack.c.b16 %v430, %v428
    %v627 = vpack.c.b16 %v433, %v431
    %v628 = vpack.c.b16 %v434, %v432
    %v629 = vpack.c.b16 %v437, %v435
    %v630 = vpack.c.b16 %v438, %v436
    %v631 = vpack.c.b16 %v441, %v439
    %v632 = vpack.c.b16 %v442, %v440
    %v633 = vpack.c.b16 %v445, %v443
    %v634 = vpack.c.b16 %v446, %v444
    %v635 = vpack.c.b16 %v449, %v447
    %v636 = vpack.c.b16 %v450, %v448
    %v637 = vpack.c.b16 %v453, %v451
    %v638 = vpack.c.b16 %v454, %v452
    %v639 = vpack.c.b16 %v457, %v455
    %v640 = vpack.c.b16 %v458, %v456
    %v641 = vpack.c.b16 %v461, %v459
    %v642 = vpack.c.b16 %v462, %v460
    %v643 = vpack.c.b16 %v465, %v463
    %v644 = vpack.c.b16 %v466, %v464
    %v645 = vpack.c.b16 %v469, %v467
    %v646 = vpack.c.b16 %v470, %v468
    %v647 = vpack.c.b16 %v473, %v471
    %v648 = vpack.c.b16 %v474, %v472
    %v649 = vpack.c.b16 %v477, %v475
    %v650 = vpack.c.b16 %v478, %v476
    %v651 = vpack.c.b16 %v481, %v479
    %v652 = vpack.c.b16 %v482, %v480
    %v653 = vpack.c.b16 %v485, %v483
    %v654 = vpack.c.b16 %v486, %v484
    %v655 = vpack.c.b16 %v489, %v487
    %v656 = vpack.c.b16 %v490, %v488
    %v657 = vpack.c.b16 %v493, %v491
    %v658 = vpack.c.b16 %v494, %v492
    %v659 = vpack.c.b16 %v497, %v495
    %v660 = vpack.c.b16 %v498, %v496
    %v661 = vpack.c.b16 %v501, %v499
    %v662 = vpack.c.b16 %v502, %v500
    %v663 = vpack.c.b16 %v505, %v503
    %v664 = vpack.c.b16 %v506, %v504
    %v665 = vpack.c.b16 %v509, %v507
    %v666 = vpack.c.b16 %v510, %v508
    %v667 = vpack.c.b16 %v513, %v511
    %v668 = vpack.c.b16 %v514, %v512
    %v669 = vpack.c.b16 %v517, %v515
    %v670 = vpack.c.b16 %v518, %v516
    %v671 = vpack.c.b16 %v521, %v519
    %v672 = vpack.c.b16 %v522, %v520
    %v673 = vpack.c.b16 %v525, %v523
    %v674 = vpack.c.b16 %v526, %v524
    %v675 = vpack.c.b16 %v529, %v527
    %v676 = vpack.c.b16 %v530, %v528
    %v677 = vpack.c.b16 %v533, %v531
    %v678 = vpack.c.b16 %v534, %v532
    %v679 = vpack.c.b16 %v537, %v535
    %v680 = vpack.c.b16 %v538, %v536
    %v681 = vpack.c.b16 %v541, %v539
    %v682 = vpack.c.b16 %v542, %v540
    %v683 = vpack.c.b16 %v545, %v543
    %v684 = vpack.c.b16 %v546, %v544
    %v685 = vpack.c.b16 %v549, %v547
    %v686 = vpack.c.b16 %v550, %v548
    %v687 = vpack.c.b16 %v553, %v551
    %v688 = vpack.c.b16 %v554, %v552
    %v689 = vpack.c.b16 %v557, %v555
    %v690 = vpack.c.b16 %v558, %v556
    %v691 = vpack.c.b16 %v561, %v559
    %v692 = vpack.c.b16 %v562, %v560
    %v693 = vpack.c.b16 %v565, %v563
    %v694 = vpack.c.b16 %v566, %v564
    %v695 = vpack.c.b16 %v569, %v567
    %v696 = vpack.c.b16 %v570, %v568
    %v697 = vpack.c.b16 %v573, %v571
    %v698 = vpack.c.b16 %v574, %v572
    %v699 = vpack.c.b16 %v577, %v575
    %v700 = vpack.c.b16 %v578, %v576
    %v701 = vpack.c.b16 %v581, %v579
    %v702 = vpack.c.b16 %v582, %v580
    %v703 = vpack.c.b16 %v585, %v583
    %v704 = vpack.c.b16 %v586, %v584
    %v705 = vpack.c.b16 %v589, %v587
    %v706 = vpack.c.b16 %v590, %v588
    %v707 = vpack.c.b16 %v593, %v591
    %v708 = vpack.c.b16 %v594, %v592
    %v709 = vpack.c.b16 %v597, %v595
    %v710 = vpack.c.b16 %v598, %v596
    %823 = vmatpush.bf16.msra.mxu0 %v613
    %824 = vmatpush.bf16.msra.mxu0 %v611
    %825 = vmatpush.bf16.msra.mxu0 %v609
    %826 = vmatpush.bf16.msra.mxu0 %v607
    %827 = vmatpush.bf16.msra.mxu0 %v605
    %828 = vmatpush.bf16.msra.mxu0 %v603
    %829 = vmatpush.bf16.msra.mxu0 %v601
    %830 = vmatpush.bf16.msra.mxu0 %v599
    %831 = vmatmul.bf16.gmra.mxu0 %v249
    %v832 = vpop.f32.mrf.mxu0
    %v833 = vadd.f32 %v223, %v832
    %v834 = vpop.f32.mrf.mxu0
    %v835 = vadd.f32 %v223, %v834
    %836 = vdwg.mxu0
    %837 = vmatpush.bf16.msra.mxu0 %v629
    %838 = vmatpush.bf16.msra.mxu0 %v627
    %839 = vmatpush.bf16.msra.mxu0 %v625
    %840 = vmatpush.bf16.msra.mxu0 %v623
    %841 = vmatpush.bf16.msra.mxu0 %v621
    %842 = vmatpush.bf16.msra.mxu0 %v619
    %843 = vmatpush.bf16.msra.mxu0 %v617
    %844 = vmatpush.bf16.msra.mxu0 %v615
    %845 = vmatmul.bf16.gmra.mxu0 %v250
    %v846 = vpop.f32.mrf.mxu0
    %v847 = vadd.f32 %v833, %v846
    %v848 = vpop.f32.mrf.mxu0
    %v849 = vadd.f32 %v835, %v848
    %850 = vdwg.mxu0
    %851 = vmatpush.bf16.msra.mxu0 %v645
    %852 = vmatpush.bf16.msra.mxu0 %v643
    %853 = vmatpush.bf16.msra.mxu0 %v641
    %854 = vmatpush.bf16.msra.mxu0 %v639
    %855 = vmatpush.bf16.msra.mxu0 %v637
    %856 = vmatpush.bf16.msra.mxu0 %v635
    %857 = vmatpush.bf16.msra.mxu0 %v633
    %858 = vmatpush.bf16.msra.mxu0 %v631
    %859 = vmatmul.bf16.gmra.mxu0 %v251
    %v860 = vpop.f32.mrf.mxu0
    %v861 = vadd.f32 %v847, %v860
    %v862 = vpop.f32.mrf.mxu0
    %v863 = vadd.f32 %v849, %v862
    %864 = vdwg.mxu0
    %865 = vmatpush.bf16.msra.mxu0 %v661
    %866 = vmatpush.bf16.msra.mxu0 %v659
    %867 = vmatpush.bf16.msra.mxu0 %v657
    %868 = vmatpush.bf16.msra.mxu0 %v655
    %869 = vmatpush.bf16.msra.mxu0 %v653
    %870 = vmatpush.bf16.msra.mxu0 %v651
    %871 = vmatpush.bf16.msra.mxu0 %v649
    %872 = vmatpush.bf16.msra.mxu0 %v647
    %873 = vmatmul.bf16.gmra.mxu0 %v252
    %v874 = vpop.f32.mrf.mxu0
    %v875 = vadd.f32 %v861, %v874
    %v876 = vpop.f32.mrf.mxu0
    %v877 = vadd.f32 %v863, %v876
    %878 = vdwg.mxu0
    %879 = vmatpush.bf16.msra.mxu0 %v677
    %880 = vmatpush.bf16.msra.mxu0 %v675
    %881 = vmatpush.bf16.msra.mxu0 %v673
    %882 = vmatpush.bf16.msra.mxu0 %v671
    %883 = vmatpush.bf16.msra.mxu0 %v669
    %884 = vmatpush.bf16.msra.mxu0 %v667
    %885 = vmatpush.bf16.msra.mxu0 %v665
    %886 = vmatpush.bf16.msra.mxu0 %v663
    %887 = vmatmul.bf16.gmra.mxu0 %v253
    %v888 = vpop.f32.mrf.mxu0
    %v889 = vadd.f32 %v875, %v888
    %v890 = vpop.f32.mrf.mxu0
    %v891 = vadd.f32 %v877, %v890
    %892 = vdwg.mxu0
    %893 = vmatpush.bf16.msra.mxu0 %v693
    %894 = vmatpush.bf16.msra.mxu0 %v691
    %895 = vmatpush.bf16.msra.mxu0 %v689
    %896 = vmatpush.bf16.msra.mxu0 %v687
    %897 = vmatpush.bf16.msra.mxu0 %v685
    %898 = vmatpush.bf16.msra.mxu0 %v683
    %899 = vmatpush.bf16.msra.mxu0 %v681
    %900 = vmatpush.bf16.msra.mxu0 %v679
    %901 = vmatmul.bf16.gmra.mxu0 %v254
    %v902 = vpop.f32.mrf.mxu0
    %v903 = vadd.f32 %v889, %v902
    %v904 = vpop.f32.mrf.mxu0
    %v905 = vadd.f32 %v891, %v904
    %906 = vdwg.mxu0
    %907 = vmatpush.bf16.msra.mxu0 %v709
    %908 = vmatpush.bf16.msra.mxu0 %v707
    %909 = vmatpush.bf16.msra.mxu0 %v705
    %910 = vmatpush.bf16.msra.mxu0 %v703
    %911 = vmatpush.bf16.msra.mxu0 %v701
    %912 = vmatpush.bf16.msra.mxu0 %v699
    %913 = vmatpush.bf16.msra.mxu0 %v697
    %914 = vmatpush.bf16.msra.mxu0 %v695
    %915 = vmatmul.bf16.gmra.mxu0 %v255
    %v916 = vpop.f32.mrf.mxu0
    %v917 = vadd.f32 %v903, %v916
    %v918 = vpop.f32.mrf.mxu0
    %v919 = vadd.f32 %v905, %v918
    %920 = vdwg.mxu0
    %921 = vmatpush.bf16.msra.mxu0 %v614
    %922 = vmatpush.bf16.msra.mxu0 %v612
    %923 = vmatpush.bf16.msra.mxu0 %v610
    %924 = vmatpush.bf16.msra.mxu0 %v608
    %925 = vmatpush.bf16.msra.mxu0 %v606
    %926 = vmatpush.bf16.msra.mxu0 %v604
    %927 = vmatpush.bf16.msra.mxu0 %v602
    %928 = vmatpush.bf16.msra.mxu0 %v600
    %929 = vmatmul.bf16.gmra.mxu0 %v249
    %v930 = vpop.f32.mrf.mxu0
    %v931 = vadd.f32 %v224, %v930
    %v932 = vpop.f32.mrf.mxu0
    %v933 = vadd.f32 %v224, %v932
    %934 = vdwg.mxu0
    %935 = vmatpush.bf16.msra.mxu0 %v630
    %936 = vmatpush.bf16.msra.mxu0 %v628
    %937 = vmatpush.bf16.msra.mxu0 %v626
    %938 = vmatpush.bf16.msra.mxu0 %v624
    %939 = vmatpush.bf16.msra.mxu0 %v622
    %940 = vmatpush.bf16.msra.mxu0 %v620
    %941 = vmatpush.bf16.msra.mxu0 %v618
    %942 = vmatpush.bf16.msra.mxu0 %v616
    %943 = vmatmul.bf16.gmra.mxu0 %v250
    %v944 = vpop.f32.mrf.mxu0
    %v945 = vadd.f32 %v931, %v944
    %v946 = vpop.f32.mrf.mxu0
    %v947 = vadd.f32 %v933, %v946
    %948 = vdwg.mxu0
    %949 = vmatpush.bf16.msra.mxu0 %v646
    %950 = vmatpush.bf16.msra.mxu0 %v644
    %951 = vmatpush.bf16.msra.mxu0 %v642
    %952 = vmatpush.bf16.msra.mxu0 %v640
    %953 = vmatpush.bf16.msra.mxu0 %v638
    %954 = vmatpush.bf16.msra.mxu0 %v636
    %955 = vmatpush.bf16.msra.mxu0 %v634
    %956 = vmatpush.bf16.msra.mxu0 %v632
    %957 = vmatmul.bf16.gmra.mxu0 %v251
    %v958 = vpop.f32.mrf.mxu0
    %v959 = vadd.f32 %v945, %v958
    %v960 = vpop.f32.mrf.mxu0
    %v961 = vadd.f32 %v947, %v960
    %962 = vdwg.mxu0
    %963 = vmatpush.bf16.msra.mxu0 %v662
    %964 = vmatpush.bf16.msra.mxu0 %v660
    %965 = vmatpush.bf16.msra.mxu0 %v658
    %966 = vmatpush.bf16.msra.mxu0 %v656
    %967 = vmatpush.bf16.msra.mxu0 %v654
    %968 = vmatpush.bf16.msra.mxu0 %v652
    %969 = vmatpush.bf16.msra.mxu0 %v650
    %970 = vmatpush.bf16.msra.mxu0 %v648
    %971 = vmatmul.bf16.gmra.mxu0 %v252
    %v972 = vpop.f32.mrf.mxu0
    %v973 = vadd.f32 %v959, %v972
    %v974 = vpop.f32.mrf.mxu0
    %v975 = vadd.f32 %v961, %v974
    %976 = vdwg.mxu0
    %977 = vmatpush.bf16.msra.mxu0 %v678
    %978 = vmatpush.bf16.msra.mxu0 %v676
    %979 = vmatpush.bf16.msra.mxu0 %v674
    %980 = vmatpush.bf16.msra.mxu0 %v672
    %981 = vmatpush.bf16.msra.mxu0 %v670
    %982 = vmatpush.bf16.msra.mxu0 %v668
    %983 = vmatpush.bf16.msra.mxu0 %v666
    %984 = vmatpush.bf16.msra.mxu0 %v664
    %985 = vmatmul.bf16.gmra.mxu0 %v253
    %v986 = vpop.f32.mrf.mxu0
    %v987 = vadd.f32 %v973, %v986
    %v988 = vpop.f32.mrf.mxu0
    %v989 = vadd.f32 %v975, %v988
    %990 = vdwg.mxu0
    %991 = vmatpush.bf16.msra.mxu0 %v694
    %992 = vmatpush.bf16.msra.mxu0 %v692
    %993 = vmatpush.bf16.msra.mxu0 %v690
    %994 = vmatpush.bf16.msra.mxu0 %v688
    %995 = vmatpush.bf16.msra.mxu0 %v686
    %996 = vmatpush.bf16.msra.mxu0 %v684
    %997 = vmatpush.bf16.msra.mxu0 %v682
    %998 = vmatpush.bf16.msra.mxu0 %v680
    %999 = vmatmul.bf16.gmra.mxu0 %v254
    %v1000 = vpop.f32.mrf.mxu0
    %v1001 = vadd.f32 %v987, %v1000
    %v1002 = vpop.f32.mrf.mxu0
    %v1003 = vadd.f32 %v989, %v1002
    %1004 = vdwg.mxu0
    %1005 = vmatpush.bf16.msra.mxu0 %v710
    %1006 = vmatpush.bf16.msra.mxu0 %v708
    %1007 = vmatpush.bf16.msra.mxu0 %v706
    %1008 = vmatpush.bf16.msra.mxu0 %v704
    %1009 = vmatpush.bf16.msra.mxu0 %v702
    %1010 = vmatpush.bf16.msra.mxu0 %v700
    %1011 = vmatpush.bf16.msra.mxu0 %v698
    %1012 = vmatpush.bf16.msra.mxu0 %v696
    %1013 = vmatmul.bf16.gmra.mxu0 %v255
    %v1014 = vpop.f32.mrf.mxu0
    %v1015 = vadd.f32 %v1001, %v1014
    %v1016 = vpop.f32.mrf.mxu0
    %v1017 = vadd.f32 %v1003, %v1016
    %1018 = vdwg.mxu0
    %v1019 = vmax.f32 %v917, 0.0
    %v1020 = vmax.f32 %v1015, 0.0
    %v1021 = vmax.f32 %v919, 0.0
    %v1022 = vmax.f32 %v1017, 0.0
    %v1023 = vpack.c.bf16 %v1021, %v1019
    %v1024 = vpack.c.bf16 %v1022, %v1020
    %v1025 = vld [vmem:[#allocation7] sm:$0xf]
    %v1026 = vld [vmem:[#allocation7 + $0x4] sm:$0xf]
    %v1027 = vld [vmem:[#allocation7 + $0x8] sm:$0xf]
    %v1028 = vld [vmem:[#allocation7 + $0xc] sm:$0xf]
    %v1029 = vld [vmem:[#allocation7 + $0x10] sm:$0xf]
    %v1030 = vld [vmem:[#allocation7 + $0x14] sm:$0xf]
    %v1031 = vld [vmem:[#allocation7 + $0x18] sm:$0xf]
    %v1032 = vld [vmem:[#allocation7 + $0x1c] sm:$0xf]
    %v1033 = vld [vmem:[#allocation7 + $0x20] sm:$0xf]
    %v1034 = vld [vmem:[#allocation7 + $0x24] sm:$0xf]
    %v1035 = vld [vmem:[#allocation7 + $0x28] sm:$0xf]
    %v1036 = vld [vmem:[#allocation7 + $0x2c] sm:$0xf]
    %v1037 = vld [vmem:[#allocation7 + $0x30] sm:$0xf]
    %v1038 = vld [vmem:[#allocation7 + $0x34] sm:$0xf]
    %v1039 = vld [vmem:[#allocation7 + $0x38] sm:$0xf]
    %v1040 = vld [vmem:[#allocation7 + $0x3c] sm:$0xf]
    %v1041 = vld [vmem:[#allocation7 + $0x40] sm:$0xf]
    %v1042 = vld [vmem:[#allocation7 + $0x44] sm:$0xf]
    %v1043 = vld [vmem:[#allocation7 + $0x48] sm:$0xf]
    %v1044 = vld [vmem:[#allocation7 + $0x4c] sm:$0xf]
    %v1045 = vld [vmem:[#allocation7 + $0x50] sm:$0xf]
    %v1046 = vld [vmem:[#allocation7 + $0x54] sm:$0xf]
    %v1047 = vld [vmem:[#allocation7 + $0x58] sm:$0xf]
    %v1048 = vld [vmem:[#allocation7 + $0x5c] sm:$0xf]
    %v1049 = vld [vmem:[#allocation7 + $0x60] sm:$0xf]
    %v1050 = vld [vmem:[#allocation7 + $0x64] sm:$0xf]
    %v1051 = vld [vmem:[#allocation7 + $0x68] sm:$0xf]
    %v1052 = vld [vmem:[#allocation7 + $0x6c] sm:$0xf]
    %v1053 = vld [vmem:[#allocation7 + $0x70] sm:$0xf]
    %v1054 = vld [vmem:[#allocation7 + $0x74] sm:$0xf]
    %v1055 = vld [vmem:[#allocation7 + $0x78] sm:$0xf]
    %v1056 = vld [vmem:[#allocation7 + $0x7c] sm:$0xf]
    %v1057 = vld [vmem:[%s5] sm:$0x1]
    %v1059 = vperm.slane %v1057, 0
    %v1093 = vunpack.c.l.b16 %v1025
    %v1094 = vunpack.c.l.b16 %v1026
    %v1095 = vunpack.c.l.b16 %v1027
    %v1096 = vunpack.c.l.b16 %v1028
    %v1097 = vunpack.c.l.b16 %v1029
    %v1098 = vunpack.c.l.b16 %v1030
    %v1099 = vunpack.c.l.b16 %v1031
    %v1100 = vunpack.c.l.b16 %v1032
    %v1101 = vunpack.c.l.b16 %v1033
    %v1102 = vunpack.c.l.b16 %v1034
    %v1103 = vunpack.c.l.b16 %v1035
    %v1104 = vunpack.c.l.b16 %v1036
    %v1105 = vunpack.c.l.b16 %v1037
    %v1106 = vunpack.c.l.b16 %v1038
    %v1107 = vunpack.c.l.b16 %v1039
    %v1108 = vunpack.c.l.b16 %v1040
    %v1109 = vunpack.c.l.b16 %v1041
    %v1110 = vunpack.c.l.b16 %v1042
    %v1111 = vunpack.c.l.b16 %v1043
    %v1112 = vunpack.c.l.b16 %v1044
    %v1113 = vunpack.c.l.b16 %v1045
    %v1114 = vunpack.c.l.b16 %v1046
    %v1115 = vunpack.c.l.b16 %v1047
    %v1116 = vunpack.c.l.b16 %v1048
    %v1117 = vunpack.c.l.b16 %v1049
    %v1118 = vunpack.c.l.b16 %v1050
    %v1119 = vunpack.c.l.b16 %v1051
    %v1120 = vunpack.c.l.b16 %v1052
    %v1121 = vunpack.c.l.b16 %v1053
    %v1122 = vunpack.c.l.b16 %v1054
    %v1123 = vunpack.c.l.b16 %v1055
    %v1124 = vunpack.c.l.b16 %v1056
    %v1125 = vpack.c.b16 %v1094, %v1093
    %v1126 = vpack.c.b16 %v1096, %v1095
    %v1127 = vpack.c.b16 %v1098, %v1097
    %v1128 = vpack.c.b16 %v1100, %v1099
    %v1129 = vpack.c.b16 %v1102, %v1101
    %v1130 = vpack.c.b16 %v1104, %v1103
    %v1131 = vpack.c.b16 %v1106, %v1105
    %v1132 = vpack.c.b16 %v1108, %v1107
    %v1133 = vpack.c.b16 %v1110, %v1109
    %v1134 = vpack.c.b16 %v1112, %v1111
    %v1135 = vpack.c.b16 %v1114, %v1113
    %v1136 = vpack.c.b16 %v1116, %v1115
    %v1137 = vpack.c.b16 %v1118, %v1117
    %v1138 = vpack.c.b16 %v1120, %v1119
    %v1139 = vpack.c.b16 %v1122, %v1121
    %v1140 = vpack.c.b16 %v1124, %v1123
    %1157 = vmatpush.bf16.msra.mxu0 %v1132
    %1158 = vmatpush.bf16.msra.mxu0 %v1131
    %1159 = vmatpush.bf16.msra.mxu0 %v1130
    %1160 = vmatpush.bf16.msra.mxu0 %v1129
    %1161 = vmatpush.bf16.msra.mxu0 %v1128
    %1162 = vmatpush.bf16.msra.mxu0 %v1127
    %1163 = vmatpush.bf16.msra.mxu0 %v1126
    %1164 = vmatpush.bf16.msra.mxu0 %v1125
    %1165 = vmatmul.bf16.gmra.mxu0 %v1023
    %v1166 = vpop.f32.mrf.mxu0
    %v1167 = vadd.f32 %v1059, %v1166
    %v1168 = vpop.f32.mrf.mxu0
    %v1169 = vadd.f32 %v1059, %v1168
    %1170 = vdwg.mxu0
    %1171 = vmatpush.bf16.msra.mxu0 %v1140
    %1172 = vmatpush.bf16.msra.mxu0 %v1139
    %1173 = vmatpush.bf16.msra.mxu0 %v1138
    %1174 = vmatpush.bf16.msra.mxu0 %v1137
    %1175 = vmatpush.bf16.msra.mxu0 %v1136
    %1176 = vmatpush.bf16.msra.mxu0 %v1135
    %1177 = vmatpush.bf16.msra.mxu0 %v1134
    %1178 = vmatpush.bf16.msra.mxu0 %v1133
    %1179 = vmatmul.bf16.gmra.mxu0 %v1024
    %v1180 = vpop.f32.mrf.mxu0
    %v1181 = vadd.f32 %v1167, %v1180
    %v1182 = vpop.f32.mrf.mxu0
    %v1183 = vadd.f32 %v1169, %v1182
    %1184 = vdwg.mxu0
    %vm1185 = vcmask 31744
    %1186 = vst.msk [vmem:[%s11] sm:$0xff] %vm1185, %v1181
    %1187 = vst.msk [vmem:[%s11 + $0x8] sm:$0xff] %vm1185, %v1183
    %v1188 = vld [vmem:[%s1] sm:$0xff]
    %v1189 = vld [vmem:[%s1 + $0x8] sm:$0xff]
    %v1190 = vmul.f32 %v1181, 0.5
    %v1191 = vmul.f32 %v1183, 0.5
    %v1192 = vmul.f32 %v1190, 1.442695
    %v1193 = vpow.pop %v1192
    %v1194 = vmul.f32 %v1191, 1.442695
    %v1195 = vpow.pop %v1194
    %1198 = vrot.lane.b32.xlu0 %v1193, 126
    %v1199 = vpop.permute.xlu0 %1198
    %1200 = vrot.lane.b32.xlu0 %v1195, 126
    %v1201 = vpop.permute.xlu0 %1200
    %v1204 = vmul.f32 %v1188, %v1199
    %v1205 = vmul.f32 %v1189, %v1201
    %v1206 = vadd.f32 %v1181, %v1204
    %v1207 = vadd.f32 %v1183, %v1205
    %v1208 = vld [vmem:[%s6] sm:$0xff]
    %v1209 = vld [vmem:[%s6 + $0x8] sm:$0xff]
    %v1210 = vld [vmem:[%s7] sm:$0x3]
    %v1212 = vperm.slane %v1210, 0
    %v1213 = vperm.slane %v1210, 1
    %vm1216 = vcmask 64512
    %v1218 = vsel %vm1216, %v1206, 0
    %v1221 = vsel %vm1216, %v1207, 0
    %1223 = vmatpush.msra.mxu0 0.0
    %1224 = vmatpush.msra.mxu0 0.0
    %1225 = vmatpush.msra.mxu0 0.0
    %1226 = vmatpush.msra.mxu0 0.0
    %1227 = vmatpush.msra.mxu0 0.0
    %1228 = vmatpush.msra.mxu0 0.0
    %1229 = vmatpush.msra.mxu0 0.0
    %1230 = vmatpush.msra.mxu0 0.0
    %1231 = vmatpush.msra.mxu0 0.0
    %1232 = vmatpush.msra.mxu0 0.0
    %1233 = vmatpush.msra.mxu0 0.0
    %1234 = vmatpush.msra.mxu0 0.0
    %1235 = vmatpush.msra.mxu0 0.0
    %1236 = vmatpush.msra.mxu0 0.0
    %1237 = vmatpush.msra.mxu0 0.0
    %1238 = vmatpush.msra.mxu0 %v1208
    %1239 = vmatmul.f32.gmra.mxu0 %v1218
    %v1240 = vpop.f32.mrf.mxu0
    %v1241 = vadd.f32 %v1212, %v1240
    %1242 = vmatmul.f32.gmra.mxu0 %v1221
    %v1243 = vpop.f32.mrf.mxu0
    %v1244 = vadd.f32 %v1212, %v1243
    %1245 = vdwg.mxu0
    %1246 = vmatpush.msra.mxu0 0.0
    %1247 = vmatpush.msra.mxu0 0.0
    %1248 = vmatpush.msra.mxu0 0.0
    %1249 = vmatpush.msra.mxu0 0.0
    %1250 = vmatpush.msra.mxu0 0.0
    %1251 = vmatpush.msra.mxu0 0.0
    %1252 = vmatpush.msra.mxu0 0.0
    %1253 = vmatpush.msra.mxu0 0.0
    %1254 = vmatpush.msra.mxu0 0.0
    %1255 = vmatpush.msra.mxu0 0.0
    %1256 = vmatpush.msra.mxu0 0.0
    %1257 = vmatpush.msra.mxu0 0.0
    %1258 = vmatpush.msra.mxu0 0.0
    %1259 = vmatpush.msra.mxu0 0.0
    %1260 = vmatpush.msra.mxu0 0.0
    %1261 = vmatpush.msra.mxu0 %v1209
    %1262 = vmatmul.f32.gmra.mxu0 %v1218
    %v1263 = vpop.f32.mrf.mxu0
    %v1264 = vadd.f32 %v1213, %v1263
    %1265 = vmatmul.f32.gmra.mxu0 %v1221
    %v1266 = vpop.f32.mrf.mxu0
    %v1267 = vadd.f32 %v1213, %v1266
    %1268 = vdwg.mxu0
    %v1269 = vmax.f32 %v1241, 0.0
    %v1270 = vmax.f32 %v1264, 0.0
    %v1271 = vmax.f32 %v1244, 0.0
    %v1272 = vmax.f32 %v1267, 0.0
    %v1273 = vpack.c.bf16 %v1271, %v1269
    %v1274 = vpack.c.bf16 %v1272, %v1270
    %v1275 = vld [vmem:[#allocation8] sm:$0xff]
    %v1276 = vld [vmem:[#allocation8 + $0x8] sm:$0xff]
    %v1277 = vld [vmem:[#allocation8 + $0x10] sm:$0xff]
    %v1278 = vld [vmem:[#allocation8 + $0x18] sm:$0xf]
    %v1279 = vld [vmem:[#allocation8 + $0x1c] sm:$0xff]
    %v1280 = vld [vmem:[#allocation8 + $0x24] sm:$0xff]
    %v1281 = vld [vmem:[#allocation8 + $0x2c] sm:$0xff]
    %v1282 = vld [vmem:[#allocation8 + $0x34] sm:$0xf]
    %v1283 = vld [vmem:[#allocation8 + $0x38] sm:$0xff]
    %v1284 = vld [vmem:[#allocation8 + $0x40] sm:$0xff]
    %v1285 = vld [vmem:[#allocation8 + $0x48] sm:$0xff]
    %v1286 = vld [vmem:[#allocation8 + $0x50] sm:$0xf]
    %v1287 = vld [vmem:[#allocation8 + $0x54] sm:$0xff]
    %v1288 = vld [vmem:[#allocation8 + $0x5c] sm:$0xff]
    %v1289 = vld [vmem:[#allocation8 + $0x64] sm:$0xff]
    %v1290 = vld [vmem:[#allocation8 + $0x6c] sm:$0xf]
    %v1291 = vld [vmem:[#allocation8 + $0x70] sm:$0xff]
    %v1292 = vld [vmem:[#allocation8 + $0x78] sm:$0xff]
    %v1293 = vld [vmem:[#allocation8 + $0x80] sm:$0xff]
    %v1294 = vld [vmem:[#allocation8 + $0x88] sm:$0xf]
    %v1295 = vld [vmem:[#allocation8 + $0x8c] sm:$0xff]
    %v1296 = vld [vmem:[#allocation8 + $0x94] sm:$0xff]
    %v1297 = vld [vmem:[#allocation8 + $0x9c] sm:$0xff]
    %v1298 = vld [vmem:[#allocation8 + $0xa4] sm:$0xf]
    %v1299 = vld [vmem:[#allocation8 + $0xa8] sm:$0xff]
    %v1300 = vld [vmem:[#allocation8 + $0xb0] sm:$0xff]
    %v1301 = vld [vmem:[#allocation8 + $0xb8] sm:$0xff]
    %v1302 = vld [vmem:[#allocation8 + $0xc0] sm:$0xf]
    %v1303 = vld [vmem:[#allocation8 + $0xc4] sm:$0xff]
    %v1304 = vld [vmem:[#allocation8 + $0xcc] sm:$0xff]
    %v1305 = vld [vmem:[#allocation8 + $0xd4] sm:$0xff]
    %v1306 = vld [vmem:[#allocation8 + $0xdc] sm:$0xf]
    %v1307 = vld [vmem:[#allocation8 + $0xe0] sm:$0xff]
    %v1308 = vld [vmem:[#allocation8 + $0xe8] sm:$0xff]
    %v1309 = vld [vmem:[#allocation8 + $0xf0] sm:$0xff]
    %v1310 = vld [vmem:[#allocation8 + $0xf8] sm:$0xf]
    %v1311 = vld [vmem:[#allocation8 + $0xfc] sm:$0xff]
    %v1312 = vld [vmem:[#allocation8 + $0x104] sm:$0xff]
    %v1313 = vld [vmem:[#allocation8 + $0x10c] sm:$0xff]
    %v1314 = vld [vmem:[#allocation8 + $0x114] sm:$0xf]
    %v1315 = vld [vmem:[#allocation8 + $0x118] sm:$0xff]
    %v1316 = vld [vmem:[#allocation8 + $0x120] sm:$0xff]
    %v1317 = vld [vmem:[#allocation8 + $0x128] sm:$0xff]
    %v1318 = vld [vmem:[#allocation8 + $0x130] sm:$0xf]
    %v1319 = vld [vmem:[#allocation8 + $0x134] sm:$0xff]
    %v1320 = vld [vmem:[#allocation8 + $0x13c] sm:$0xff]
    %v1321 = vld [vmem:[#allocation8 + $0x144] sm:$0xff]
    %v1322 = vld [vmem:[#allocation8 + $0x14c] sm:$0xf]
    %v1323 = vld [vmem:[#allocation8 + $0x150] sm:$0xff]
    %v1324 = vld [vmem:[#allocation8 + $0x158] sm:$0xff]
    %v1325 = vld [vmem:[#allocation8 + $0x160] sm:$0xff]
    %v1326 = vld [vmem:[#allocation8 + $0x168] sm:$0xf]
    %v1327 = vld [vmem:[#allocation8 + $0x16c] sm:$0xff]
    %v1328 = vld [vmem:[#allocation8 + $0x174] sm:$0xff]
    %v1329 = vld [vmem:[#allocation8 + $0x17c] sm:$0xff]
    %v1330 = vld [vmem:[#allocation8 + $0x184] sm:$0xf]
    %v1331 = vld [vmem:[#allocation8 + $0x188] sm:$0xff]
    %v1332 = vld [vmem:[#allocation8 + $0x190] sm:$0xff]
    %v1333 = vld [vmem:[#allocation8 + $0x198] sm:$0xff]
    %v1334 = vld [vmem:[#allocation8 + $0x1a0] sm:$0xf]
    %v1335 = vld [vmem:[#allocation8 + $0x1a4] sm:$0xff]
    %v1336 = vld [vmem:[#allocation8 + $0x1ac] sm:$0xff]
    %v1337 = vld [vmem:[#allocation8 + $0x1b4] sm:$0xff]
    %v1338 = vld [vmem:[#allocation8 + $0x1bc] sm:$0xf]
    %v1339 = vld [vmem:[#allocation8 + $0x1c0] sm:$0xff]
    %v1340 = vld [vmem:[#allocation8 + $0x1c8] sm:$0xff]
    %v1341 = vld [vmem:[#allocation8 + $0x1d0] sm:$0xff]
    %v1342 = vld [vmem:[#allocation8 + $0x1d8] sm:$0xf]
    %v1343 = vld [vmem:[#allocation8 + $0x1dc] sm:$0xff]
    %v1344 = vld [vmem:[#allocation8 + $0x1e4] sm:$0xff]
    %v1345 = vld [vmem:[#allocation8 + $0x1ec] sm:$0xff]
    %v1346 = vld [vmem:[#allocation8 + $0x1f4] sm:$0xf]
    %v1347 = vld [vmem:[#allocation8 + $0x1f8] sm:$0xff]
    %v1348 = vld [vmem:[#allocation8 + $0x200] sm:$0xff]
    %v1349 = vld [vmem:[#allocation8 + $0x208] sm:$0xff]
    %v1350 = vld [vmem:[#allocation8 + $0x210] sm:$0xf]
    %v1351 = vld [vmem:[#allocation8 + $0x214] sm:$0xff]
    %v1352 = vld [vmem:[#allocation8 + $0x21c] sm:$0xff]
    %v1353 = vld [vmem:[#allocation8 + $0x224] sm:$0xff]
    %v1354 = vld [vmem:[#allocation8 + $0x22c] sm:$0xf]
    %v1355 = vld [vmem:[#allocation8 + $0x230] sm:$0xff]
    %v1356 = vld [vmem:[#allocation8 + $0x238] sm:$0xff]
    %v1357 = vld [vmem:[#allocation8 + $0x240] sm:$0xff]
    %v1358 = vld [vmem:[#allocation8 + $0x248] sm:$0xf]
    %v1359 = vld [vmem:[#allocation8 + $0x24c] sm:$0xff]
    %v1360 = vld [vmem:[#allocation8 + $0x254] sm:$0xff]
    %v1361 = vld [vmem:[#allocation8 + $0x25c] sm:$0xff]
    %v1362 = vld [vmem:[#allocation8 + $0x264] sm:$0xf]
    %v1363 = vld [vmem:[#allocation8 + $0x268] sm:$0xff]
    %v1364 = vld [vmem:[#allocation8 + $0x270] sm:$0xff]
    %v1365 = vld [vmem:[#allocation8 + $0x278] sm:$0xff]
    %v1366 = vld [vmem:[#allocation8 + $0x280] sm:$0xf]
    %v1367 = vld [vmem:[#allocation8 + $0x284] sm:$0xff]
    %v1368 = vld [vmem:[#allocation8 + $0x28c] sm:$0xff]
    %v1369 = vld [vmem:[#allocation8 + $0x294] sm:$0xff]
    %v1370 = vld [vmem:[#allocation8 + $0x29c] sm:$0xf]
    %v1371 = vld [vmem:[#allocation8 + $0x2a0] sm:$0xff]
    %v1372 = vld [vmem:[#allocation8 + $0x2a8] sm:$0xff]
    %v1373 = vld [vmem:[#allocation8 + $0x2b0] sm:$0xff]
    %v1374 = vld [vmem:[#allocation8 + $0x2b8] sm:$0xf]
    %v1375 = vld [vmem:[#allocation8 + $0x2bc] sm:$0xff]
    %v1376 = vld [vmem:[#allocation8 + $0x2c4] sm:$0xff]
    %v1377 = vld [vmem:[#allocation8 + $0x2cc] sm:$0xff]
    %v1378 = vld [vmem:[#allocation8 + $0x2d4] sm:$0xf]
    %v1379 = vld [vmem:[#allocation8 + $0x2d8] sm:$0xff]
    %v1380 = vld [vmem:[#allocation8 + $0x2e0] sm:$0xff]
    %v1381 = vld [vmem:[#allocation8 + $0x2e8] sm:$0xff]
    %v1382 = vld [vmem:[#allocation8 + $0x2f0] sm:$0xf]
    %v1383 = vld [vmem:[#allocation8 + $0x2f4] sm:$0xff]
    %v1384 = vld [vmem:[#allocation8 + $0x2fc] sm:$0xff]
    %v1385 = vld [vmem:[#allocation8 + $0x304] sm:$0xff]
    %v1386 = vld [vmem:[#allocation8 + $0x30c] sm:$0xf]
    %v1387 = vld [vmem:[#allocation8 + $0x310] sm:$0xff]
    %v1388 = vld [vmem:[#allocation8 + $0x318] sm:$0xff]
    %v1389 = vld [vmem:[#allocation8 + $0x320] sm:$0xff]
    %v1390 = vld [vmem:[#allocation8 + $0x328] sm:$0xf]
    %v1391 = vld [vmem:[#allocation8 + $0x32c] sm:$0xff]
    %v1392 = vld [vmem:[#allocation8 + $0x334] sm:$0xff]
    %v1393 = vld [vmem:[#allocation8 + $0x33c] sm:$0xff]
    %v1394 = vld [vmem:[#allocation8 + $0x344] sm:$0xf]
    %v1395 = vld [vmem:[#allocation8 + $0x348] sm:$0xff]
    %v1396 = vld [vmem:[#allocation8 + $0x350] sm:$0xff]
    %v1397 = vld [vmem:[#allocation8 + $0x358] sm:$0xff]
    %v1398 = vld [vmem:[#allocation8 + $0x360] sm:$0xf]
    %v1399 = vld [vmem:[#allocation8 + $0x364] sm:$0xff]
    %v1400 = vld [vmem:[#allocation8 + $0x36c] sm:$0xff]
    %v1401 = vld [vmem:[#allocation8 + $0x374] sm:$0xff]
    %v1402 = vld [vmem:[#allocation8 + $0x37c] sm:$0xf]
    %v1403 = vld [vmem:[%s9] sm:$0xff]
    %v1405 = vperm.slane %v1403, 0
    %v1406 = vperm.slane %v1403, 1
    %v1407 = vperm.slane %v1403, 2
    %v1408 = vperm.slane %v1403, 3
    %v1409 = vperm.slane %v1403, 4
    %v1410 = vperm.slane %v1403, 5
    %v1411 = vperm.slane %v1403, 6
    %v1547 = vunpack.c.l.b16 %v1275
    %v1548 = vunpack.c.h.b16 %v1275
    %v1549 = vunpack.c.l.b16 %v1276
    %v1550 = vunpack.c.h.b16 %v1276
    %v1551 = vunpack.c.l.b16 %v1277
    %v1552 = vunpack.c.h.b16 %v1277
    %v1553 = vunpack.c.l.b16 %v1278
    %v1554 = vunpack.c.l.b16 %v1279
    %v1555 = vunpack.c.h.b16 %v1279
    %v1556 = vunpack.c.l.b16 %v1280
    %v1557 = vunpack.c.h.b16 %v1280
    %v1558 = vunpack.c.l.b16 %v1281
    %v1559 = vunpack.c.h.b16 %v1281
    %v1560 = vunpack.c.l.b16 %v1282
    %v1561 = vunpack.c.l.b16 %v1283
    %v1562 = vunpack.c.h.b16 %v1283
    %v1563 = vunpack.c.l.b16 %v1284
    %v1564 = vunpack.c.h.b16 %v1284
    %v1565 = vunpack.c.l.b16 %v1285
    %v1566 = vunpack.c.h.b16 %v1285
    %v1567 = vunpack.c.l.b16 %v1286
    %v1568 = vunpack.c.l.b16 %v1287
    %v1569 = vunpack.c.h.b16 %v1287
    %v1570 = vunpack.c.l.b16 %v1288
    %v1571 = vunpack.c.h.b16 %v1288
    %v1572 = vunpack.c.l.b16 %v1289
    %v1573 = vunpack.c.h.b16 %v1289
    %v1574 = vunpack.c.l.b16 %v1290
    %v1575 = vunpack.c.l.b16 %v1291
    %v1576 = vunpack.c.h.b16 %v1291
    %v1577 = vunpack.c.l.b16 %v1292
    %v1578 = vunpack.c.h.b16 %v1292
    %v1579 = vunpack.c.l.b16 %v1293
    %v1580 = vunpack.c.h.b16 %v1293
    %v1581 = vunpack.c.l.b16 %v1294
    %v1582 = vunpack.c.l.b16 %v1295
    %v1583 = vunpack.c.h.b16 %v1295
    %v1584 = vunpack.c.l.b16 %v1296
    %v1585 = vunpack.c.h.b16 %v1296
    %v1586 = vunpack.c.l.b16 %v1297
    %v1587 = vunpack.c.h.b16 %v1297
    %v1588 = vunpack.c.l.b16 %v1298
    %v1589 = vunpack.c.l.b16 %v1299
    %v1590 = vunpack.c.h.b16 %v1299
    %v1591 = vunpack.c.l.b16 %v1300
    %v1592 = vunpack.c.h.b16 %v1300
    %v1593 = vunpack.c.l.b16 %v1301
    %v1594 = vunpack.c.h.b16 %v1301
    %v1595 = vunpack.c.l.b16 %v1302
    %v1596 = vunpack.c.l.b16 %v1303
    %v1597 = vunpack.c.h.b16 %v1303
    %v1598 = vunpack.c.l.b16 %v1304
    %v1599 = vunpack.c.h.b16 %v1304
    %v1600 = vunpack.c.l.b16 %v1305
    %v1601 = vunpack.c.h.b16 %v1305
    %v1602 = vunpack.c.l.b16 %v1306
    %v1603 = vunpack.c.l.b16 %v1307
    %v1604 = vunpack.c.h.b16 %v1307
    %v1605 = vunpack.c.l.b16 %v1308
    %v1606 = vunpack.c.h.b16 %v1308
    %v1607 = vunpack.c.l.b16 %v1309
    %v1608 = vunpack.c.h.b16 %v1309
    %v1609 = vunpack.c.l.b16 %v1310
    %v1610 = vunpack.c.l.b16 %v1311
    %v1611 = vunpack.c.h.b16 %v1311
    %v1612 = vunpack.c.l.b16 %v1312
    %v1613 = vunpack.c.h.b16 %v1312
    %v1614 = vunpack.c.l.b16 %v1313
    %v1615 = vunpack.c.h.b16 %v1313
    %v1616 = vunpack.c.l.b16 %v1314
    %v1617 = vunpack.c.l.b16 %v1315
    %v1618 = vunpack.c.h.b16 %v1315
    %v1619 = vunpack.c.l.b16 %v1316
    %v1620 = vunpack.c.h.b16 %v1316
    %v1621 = vunpack.c.l.b16 %v1317
    %v1622 = vunpack.c.h.b16 %v1317
    %v1623 = vunpack.c.l.b16 %v1318
    %v1624 = vunpack.c.l.b16 %v1319
    %v1625 = vunpack.c.h.b16 %v1319
    %v1626 = vunpack.c.l.b16 %v1320
    %v1627 = vunpack.c.h.b16 %v1320
    %v1628 = vunpack.c.l.b16 %v1321
    %v1629 = vunpack.c.h.b16 %v1321
    %v1630 = vunpack.c.l.b16 %v1322
    %v1631 = vunpack.c.l.b16 %v1323
    %v1632 = vunpack.c.h.b16 %v1323
    %v1633 = vunpack.c.l.b16 %v1324
    %v1634 = vunpack.c.h.b16 %v1324
    %v1635 = vunpack.c.l.b16 %v1325
    %v1636 = vunpack.c.h.b16 %v1325
    %v1637 = vunpack.c.l.b16 %v1326
    %v1638 = vunpack.c.l.b16 %v1327
    %v1639 = vunpack.c.h.b16 %v1327
    %v1640 = vunpack.c.l.b16 %v1328
    %v1641 = vunpack.c.h.b16 %v1328
    %v1642 = vunpack.c.l.b16 %v1329
    %v1643 = vunpack.c.h.b16 %v1329
    %v1644 = vunpack.c.l.b16 %v1330
    %v1645 = vunpack.c.l.b16 %v1331
    %v1646 = vunpack.c.h.b16 %v1331
    %v1647 = vunpack.c.l.b16 %v1332
    %v1648 = vunpack.c.h.b16 %v1332
    %v1649 = vunpack.c.l.b16 %v1333
    %v1650 = vunpack.c.h.b16 %v1333
    %v1651 = vunpack.c.l.b16 %v1334
    %v1652 = vunpack.c.l.b16 %v1335
    %v1653 = vunpack.c.h.b16 %v1335
    %v1654 = vunpack.c.l.b16 %v1336
    %v1655 = vunpack.c.h.b16 %v1336
    %v1656 = vunpack.c.l.b16 %v1337
    %v1657 = vunpack.c.h.b16 %v1337
    %v1658 = vunpack.c.l.b16 %v1338
    %v1659 = vunpack.c.l.b16 %v1339
    %v1660 = vunpack.c.h.b16 %v1339
    %v1661 = vunpack.c.l.b16 %v1340
    %v1662 = vunpack.c.h.b16 %v1340
    %v1663 = vunpack.c.l.b16 %v1341
    %v1664 = vunpack.c.h.b16 %v1341
    %v1665 = vunpack.c.l.b16 %v1342
    %v1666 = vunpack.c.l.b16 %v1343
    %v1667 = vunpack.c.h.b16 %v1343
    %v1668 = vunpack.c.l.b16 %v1344
    %v1669 = vunpack.c.h.b16 %v1344
    %v1670 = vunpack.c.l.b16 %v1345
    %v1671 = vunpack.c.h.b16 %v1345
    %v1672 = vunpack.c.l.b16 %v1346
    %v1673 = vunpack.c.l.b16 %v1347
    %v1674 = vunpack.c.h.b16 %v1347
    %v1675 = vunpack.c.l.b16 %v1348
    %v1676 = vunpack.c.h.b16 %v1348
    %v1677 = vunpack.c.l.b16 %v1349
    %v1678 = vunpack.c.h.b16 %v1349
    %v1679 = vunpack.c.l.b16 %v1350
    %v1680 = vunpack.c.l.b16 %v1351
    %v1681 = vunpack.c.h.b16 %v1351
    %v1682 = vunpack.c.l.b16 %v1352
    %v1683 = vunpack.c.h.b16 %v1352
    %v1684 = vunpack.c.l.b16 %v1353
    %v1685 = vunpack.c.h.b16 %v1353
    %v1686 = vunpack.c.l.b16 %v1354
    %v1687 = vunpack.c.l.b16 %v1355
    %v1688 = vunpack.c.h.b16 %v1355
    %v1689 = vunpack.c.l.b16 %v1356
    %v1690 = vunpack.c.h.b16 %v1356
    %v1691 = vunpack.c.l.b16 %v1357
    %v1692 = vunpack.c.h.b16 %v1357
    %v1693 = vunpack.c.l.b16 %v1358
    %v1694 = vunpack.c.l.b16 %v1359
    %v1695 = vunpack.c.h.b16 %v1359
    %v1696 = vunpack.c.l.b16 %v1360
    %v1697 = vunpack.c.h.b16 %v1360
    %v1698 = vunpack.c.l.b16 %v1361
    %v1699 = vunpack.c.h.b16 %v1361
    %v1700 = vunpack.c.l.b16 %v1362
    %v1701 = vunpack.c.l.b16 %v1363
    %v1702 = vunpack.c.h.b16 %v1363
    %v1703 = vunpack.c.l.b16 %v1364
    %v1704 = vunpack.c.h.b16 %v1364
    %v1705 = vunpack.c.l.b16 %v1365
    %v1706 = vunpack.c.h.b16 %v1365
    %v1707 = vunpack.c.l.b16 %v1366
    %v1708 = vunpack.c.l.b16 %v1367
    %v1709 = vunpack.c.h.b16 %v1367
    %v1710 = vunpack.c.l.b16 %v1368
    %v1711 = vunpack.c.h.b16 %v1368
    %v1712 = vunpack.c.l.b16 %v1369
    %v1713 = vunpack.c.h.b16 %v1369
    %v1714 = vunpack.c.l.b16 %v1370
    %v1715 = vunpack.c.l.b16 %v1371
    %v1716 = vunpack.c.h.b16 %v1371
    %v1717 = vunpack.c.l.b16 %v1372
    %v1718 = vunpack.c.h.b16 %v1372
    %v1719 = vunpack.c.l.b16 %v1373
    %v1720 = vunpack.c.h.b16 %v1373
    %v1721 = vunpack.c.l.b16 %v1374
    %v1722 = vunpack.c.l.b16 %v1375
    %v1723 = vunpack.c.h.b16 %v1375
    %v1724 = vunpack.c.l.b16 %v1376
    %v1725 = vunpack.c.h.b16 %v1376
    %v1726 = vunpack.c.l.b16 %v1377
    %v1727 = vunpack.c.h.b16 %v1377
    %v1728 = vunpack.c.l.b16 %v1378
    %v1729 = vunpack.c.l.b16 %v1379
    %v1730 = vunpack.c.h.b16 %v1379
    %v1731 = vunpack.c.l.b16 %v1380
    %v1732 = vunpack.c.h.b16 %v1380
    %v1733 = vunpack.c.l.b16 %v1381
    %v1734 = vunpack.c.h.b16 %v1381
    %v1735 = vunpack.c.l.b16 %v1382
    %v1736 = vunpack.c.l.b16 %v1383
    %v1737 = vunpack.c.h.b16 %v1383
    %v1738 = vunpack.c.l.b16 %v1384
    %v1739 = vunpack.c.h.b16 %v1384
    %v1740 = vunpack.c.l.b16 %v1385
    %v1741 = vunpack.c.h.b16 %v1385
    %v1742 = vunpack.c.l.b16 %v1386
    %v1743 = vunpack.c.l.b16 %v1387
    %v1744 = vunpack.c.h.b16 %v1387
    %v1745 = vunpack.c.l.b16 %v1388
    %v1746 = vunpack.c.h.b16 %v1388
    %v1747 = vunpack.c.l.b16 %v1389
    %v1748 = vunpack.c.h.b16 %v1389
    %v1749 = vunpack.c.l.b16 %v1390
    %v1750 = vunpack.c.l.b16 %v1391
    %v1751 = vunpack.c.h.b16 %v1391
    %v1752 = vunpack.c.l.b16 %v1392
    %v1753 = vunpack.c.h.b16 %v1392
    %v1754 = vunpack.c.l.b16 %v1393
    %v1755 = vunpack.c.h.b16 %v1393
    %v1756 = vunpack.c.l.b16 %v1394
    %v1757 = vunpack.c.l.b16 %v1395
    %v1758 = vunpack.c.h.b16 %v1395
    %v1759 = vunpack.c.l.b16 %v1396
    %v1760 = vunpack.c.h.b16 %v1396
    %v1761 = vunpack.c.l.b16 %v1397
    %v1762 = vunpack.c.h.b16 %v1397
    %v1763 = vunpack.c.l.b16 %v1398
    %v1764 = vunpack.c.l.b16 %v1399
    %v1765 = vunpack.c.h.b16 %v1399
    %v1766 = vunpack.c.l.b16 %v1400
    %v1767 = vunpack.c.h.b16 %v1400
    %v1768 = vunpack.c.l.b16 %v1401
    %v1769 = vunpack.c.h.b16 %v1401
    %v1770 = vunpack.c.l.b16 %v1402
    %v1771 = vpack.c.b16 %v1554, %v1547
    %v1772 = vpack.c.b16 %v1555, %v1548
    %v1773 = vpack.c.b16 %v1556, %v1549
    %v1774 = vpack.c.b16 %v1557, %v1550
    %v1775 = vpack.c.b16 %v1558, %v1551
    %v1776 = vpack.c.b16 %v1559, %v1552
    %v1777 = vpack.c.b16 %v1560, %v1553
    %v1778 = vpack.c.b16 %v1568, %v1561
    %v1779 = vpack.c.b16 %v1569, %v1562
    %v1780 = vpack.c.b16 %v1570, %v1563
    %v1781 = vpack.c.b16 %v1571, %v1564
    %v1782 = vpack.c.b16 %v1572, %v1565
    %v1783 = vpack.c.b16 %v1573, %v1566
    %v1784 = vpack.c.b16 %v1574, %v1567
    %v1785 = vpack.c.b16 %v1582, %v1575
    %v1786 = vpack.c.b16 %v1583, %v1576
    %v1787 = vpack.c.b16 %v1584, %v1577
    %v1788 = vpack.c.b16 %v1585, %v1578
    %v1789 = vpack.c.b16 %v1586, %v1579
    %v1790 = vpack.c.b16 %v1587, %v1580
    %v1791 = vpack.c.b16 %v1588, %v1581
    %v1792 = vpack.c.b16 %v1596, %v1589
    %v1793 = vpack.c.b16 %v1597, %v1590
    %v1794 = vpack.c.b16 %v1598, %v1591
    %v1795 = vpack.c.b16 %v1599, %v1592
    %v1796 = vpack.c.b16 %v1600, %v1593
    %v1797 = vpack.c.b16 %v1601, %v1594
    %v1798 = vpack.c.b16 %v1602, %v1595
    %v1799 = vpack.c.b16 %v1610, %v1603
    %v1800 = vpack.c.b16 %v1611, %v1604
    %v1801 = vpack.c.b16 %v1612, %v1605
    %v1802 = vpack.c.b16 %v1613, %v1606
    %v1803 = vpack.c.b16 %v1614, %v1607
    %v1804 = vpack.c.b16 %v1615, %v1608
    %v1805 = vpack.c.b16 %v1616, %v1609
    %v1806 = vpack.c.b16 %v1624, %v1617
    %v1807 = vpack.c.b16 %v1625, %v1618
    %v1808 = vpack.c.b16 %v1626, %v1619
    %v1809 = vpack.c.b16 %v1627, %v1620
    %v1810 = vpack.c.b16 %v1628, %v1621
    %v1811 = vpack.c.b16 %v1629, %v1622
    %v1812 = vpack.c.b16 %v1630, %v1623
    %v1813 = vpack.c.b16 %v1638, %v1631
    %v1814 = vpack.c.b16 %v1639, %v1632
    %v1815 = vpack.c.b16 %v1640, %v1633
    %v1816 = vpack.c.b16 %v1641, %v1634
    %v1817 = vpack.c.b16 %v1642, %v1635
    %v1818 = vpack.c.b16 %v1643, %v1636
    %v1819 = vpack.c.b16 %v1644, %v1637
    %v1820 = vpack.c.b16 %v1652, %v1645
    %v1821 = vpack.c.b16 %v1653, %v1646
    %v1822 = vpack.c.b16 %v1654, %v1647
    %v1823 = vpack.c.b16 %v1655, %v1648
    %v1824 = vpack.c.b16 %v1656, %v1649
    %v1825 = vpack.c.b16 %v1657, %v1650
    %v1826 = vpack.c.b16 %v1658, %v1651
    %v1827 = vpack.c.b16 %v1666, %v1659
    %v1828 = vpack.c.b16 %v1667, %v1660
    %v1829 = vpack.c.b16 %v1668, %v1661
    %v1830 = vpack.c.b16 %v1669, %v1662
    %v1831 = vpack.c.b16 %v1670, %v1663
    %v1832 = vpack.c.b16 %v1671, %v1664
    %v1833 = vpack.c.b16 %v1672, %v1665
    %v1834 = vpack.c.b16 %v1680, %v1673
    %v1835 = vpack.c.b16 %v1681, %v1674
    %v1836 = vpack.c.b16 %v1682, %v1675
    %v1837 = vpack.c.b16 %v1683, %v1676
    %v1838 = vpack.c.b16 %v1684, %v1677
    %v1839 = vpack.c.b16 %v1685, %v1678
    %v1840 = vpack.c.b16 %v1686, %v1679
    %v1841 = vpack.c.b16 %v1694, %v1687
    %v1842 = vpack.c.b16 %v1695, %v1688
    %v1843 = vpack.c.b16 %v1696, %v1689
    %v1844 = vpack.c.b16 %v1697, %v1690
    %v1845 = vpack.c.b16 %v1698, %v1691
    %v1846 = vpack.c.b16 %v1699, %v1692
    %v1847 = vpack.c.b16 %v1700, %v1693
    %v1848 = vpack.c.b16 %v1708, %v1701
    %v1849 = vpack.c.b16 %v1709, %v1702
    %v1850 = vpack.c.b16 %v1710, %v1703
    %v1851 = vpack.c.b16 %v1711, %v1704
    %v1852 = vpack.c.b16 %v1712, %v1705
    %v1853 = vpack.c.b16 %v1713, %v1706
    %v1854 = vpack.c.b16 %v1714, %v1707
    %v1855 = vpack.c.b16 %v1722, %v1715
    %v1856 = vpack.c.b16 %v1723, %v1716
    %v1857 = vpack.c.b16 %v1724, %v1717
    %v1858 = vpack.c.b16 %v1725, %v1718
    %v1859 = vpack.c.b16 %v1726, %v1719
    %v1860 = vpack.c.b16 %v1727, %v1720
    %v1861 = vpack.c.b16 %v1728, %v1721
    %v1862 = vpack.c.b16 %v1736, %v1729
    %v1863 = vpack.c.b16 %v1737, %v1730
    %v1864 = vpack.c.b16 %v1738, %v1731
    %v1865 = vpack.c.b16 %v1739, %v1732
    %v1866 = vpack.c.b16 %v1740, %v1733
    %v1867 = vpack.c.b16 %v1741, %v1734
    %v1868 = vpack.c.b16 %v1742, %v1735
    %v1869 = vpack.c.b16 %v1750, %v1743
    %v1870 = vpack.c.b16 %v1751, %v1744
    %v1871 = vpack.c.b16 %v1752, %v1745
    %v1872 = vpack.c.b16 %v1753, %v1746
    %v1873 = vpack.c.b16 %v1754, %v1747
    %v1874 = vpack.c.b16 %v1755, %v1748
    %v1875 = vpack.c.b16 %v1756, %v1749
    %v1876 = vpack.c.b16 %v1764, %v1757
    %v1877 = vpack.c.b16 %v1765, %v1758
    %v1878 = vpack.c.b16 %v1766, %v1759
    %v1879 = vpack.c.b16 %v1767, %v1760
    %v1880 = vpack.c.b16 %v1768, %v1761
    %v1881 = vpack.c.b16 %v1769, %v1762
    %v1882 = vpack.c.b16 %v1770, %v1763
    %1995 = vmatpush.bf16.msra.mxu0 %v1820
    %1996 = vmatpush.bf16.msra.mxu0 %v1813
    %1997 = vmatpush.bf16.msra.mxu0 %v1806
    %1998 = vmatpush.bf16.msra.mxu0 %v1799
    %1999 = vmatpush.bf16.msra.mxu0 %v1792
    %2000 = vmatpush.bf16.msra.mxu0 %v1785
    %2001 = vmatpush.bf16.msra.mxu0 %v1778
    %2002 = vmatpush.bf16.msra.mxu0 %v1771
    %2003 = vmatmul.bf16.gmra.mxu0 %v1273
    %v2004 = vpop.f32.mrf.mxu0
    %v2005 = vadd.f32 %v1405, %v2004
    %v2006 = vpop.f32.mrf.mxu0
    %v2007 = vadd.f32 %v1405, %v2006
    %2008 = vdwg.mxu0
    %2009 = vmatpush.bf16.msra.mxu0 %v1876
    %2010 = vmatpush.bf16.msra.mxu0 %v1869
    %2011 = vmatpush.bf16.msra.mxu0 %v1862
    %2012 = vmatpush.bf16.msra.mxu0 %v1855
    %2013 = vmatpush.bf16.msra.mxu0 %v1848
    %2014 = vmatpush.bf16.msra.mxu0 %v1841
    %2015 = vmatpush.bf16.msra.mxu0 %v1834
    %2016 = vmatpush.bf16.msra.mxu0 %v1827
    %2017 = vmatmul.bf16.gmra.mxu0 %v1274
    %v2018 = vpop.f32.mrf.mxu0
    %v2019 = vadd.f32 %v2005, %v2018
    %v2020 = vpop.f32.mrf.mxu0
    %v2021 = vadd.f32 %v2007, %v2020
    %2022 = vdwg.mxu0
    %2023 = vmatpush.bf16.msra.mxu0 %v1821
    %2024 = vmatpush.bf16.msra.mxu0 %v1814
    %2025 = vmatpush.bf16.msra.mxu0 %v1807
    %2026 = vmatpush.bf16.msra.mxu0 %v1800
    %2027 = vmatpush.bf16.msra.mxu0 %v1793
    %2028 = vmatpush.bf16.msra.mxu0 %v1786
    %2029 = vmatpush.bf16.msra.mxu0 %v1779
    %2030 = vmatpush.bf16.msra.mxu0 %v1772
    %2031 = vmatmul.bf16.gmra.mxu0 %v1273
    %v2032 = vpop.f32.mrf.mxu0
    %v2033 = vadd.f32 %v1406, %v2032
    %v2034 = vpop.f32.mrf.mxu0
    %v2035 = vadd.f32 %v1406, %v2034
    %2036 = vdwg.mxu0
    %2037 = vmatpush.bf16.msra.mxu0 %v1877
    %2038 = vmatpush.bf16.msra.mxu0 %v1870
    %2039 = vmatpush.bf16.msra.mxu0 %v1863
    %2040 = vmatpush.bf16.msra.mxu0 %v1856
    %2041 = vmatpush.bf16.msra.mxu0 %v1849
    %2042 = vmatpush.bf16.msra.mxu0 %v1842
    %2043 = vmatpush.bf16.msra.mxu0 %v1835
    %2044 = vmatpush.bf16.msra.mxu0 %v1828
    %2045 = vmatmul.bf16.gmra.mxu0 %v1274
    %v2046 = vpop.f32.mrf.mxu0
    %v2047 = vadd.f32 %v2033, %v2046
    %v2048 = vpop.f32.mrf.mxu0
    %v2049 = vadd.f32 %v2035, %v2048
    %2050 = vdwg.mxu0
    %2051 = vmatpush.bf16.msra.mxu0 %v1822
    %2052 = vmatpush.bf16.msra.mxu0 %v1815
    %2053 = vmatpush.bf16.msra.mxu0 %v1808
    %2054 = vmatpush.bf16.msra.mxu0 %v1801
    %2055 = vmatpush.bf16.msra.mxu0 %v1794
    %2056 = vmatpush.bf16.msra.mxu0 %v1787
    %2057 = vmatpush.bf16.msra.mxu0 %v1780
    %2058 = vmatpush.bf16.msra.mxu0 %v1773
    %2059 = vmatmul.bf16.gmra.mxu0 %v1273
    %v2060 = vpop.f32.mrf.mxu0
    %v2061 = vadd.f32 %v1407, %v2060
    %v2062 = vpop.f32.mrf.mxu0
    %v2063 = vadd.f32 %v1407, %v2062
    %2064 = vdwg.mxu0
    %2065 = vmatpush.bf16.msra.mxu0 %v1878
    %2066 = vmatpush.bf16.msra.mxu0 %v1871
    %2067 = vmatpush.bf16.msra.mxu0 %v1864
    %2068 = vmatpush.bf16.msra.mxu0 %v1857
    %2069 = vmatpush.bf16.msra.mxu0 %v1850
    %2070 = vmatpush.bf16.msra.mxu0 %v1843
    %2071 = vmatpush.bf16.msra.mxu0 %v1836
    %2072 = vmatpush.bf16.msra.mxu0 %v1829
    %2073 = vmatmul.bf16.gmra.mxu0 %v1274
    %v2074 = vpop.f32.mrf.mxu0
    %v2075 = vadd.f32 %v2061, %v2074
    %v2076 = vpop.f32.mrf.mxu0
    %v2077 = vadd.f32 %v2063, %v2076
    %2078 = vdwg.mxu0
    %2079 = vmatpush.bf16.msra.mxu0 %v1823
    %2080 = vmatpush.bf16.msra.mxu0 %v1816
    %2081 = vmatpush.bf16.msra.mxu0 %v1809
    %2082 = vmatpush.bf16.msra.mxu0 %v1802
    %2083 = vmatpush.bf16.msra.mxu0 %v1795
    %2084 = vmatpush.bf16.msra.mxu0 %v1788
    %2085 = vmatpush.bf16.msra.mxu0 %v1781
    %2086 = vmatpush.bf16.msra.mxu0 %v1774
    %2087 = vmatmul.bf16.gmra.mxu0 %v1273
    %v2088 = vpop.f32.mrf.mxu0
    %v2089 = vadd.f32 %v1408, %v2088
    %v2090 = vpop.f32.mrf.mxu0
    %v2091 = vadd.f32 %v1408, %v2090
    %2092 = vdwg.mxu0
    %2093 = vmatpush.bf16.msra.mxu0 %v1879
    %2094 = vmatpush.bf16.msra.mxu0 %v1872
    %2095 = vmatpush.bf16.msra.mxu0 %v1865
    %2096 = vmatpush.bf16.msra.mxu0 %v1858
    %2097 = vmatpush.bf16.msra.mxu0 %v1851
    %2098 = vmatpush.bf16.msra.mxu0 %v1844
    %2099 = vmatpush.bf16.msra.mxu0 %v1837
    %2100 = vmatpush.bf16.msra.mxu0 %v1830
    %2101 = vmatmul.bf16.gmra.mxu0 %v1274
    %v2102 = vpop.f32.mrf.mxu0
    %v2103 = vadd.f32 %v2089, %v2102
    %v2104 = vpop.f32.mrf.mxu0
    %v2105 = vadd.f32 %v2091, %v2104
    %2106 = vdwg.mxu0
    %2107 = vmatpush.bf16.msra.mxu0 %v1824
    %2108 = vmatpush.bf16.msra.mxu0 %v1817
    %2109 = vmatpush.bf16.msra.mxu0 %v1810
    %2110 = vmatpush.bf16.msra.mxu0 %v1803
    %2111 = vmatpush.bf16.msra.mxu0 %v1796
    %2112 = vmatpush.bf16.msra.mxu0 %v1789
    %2113 = vmatpush.bf16.msra.mxu0 %v1782
    %2114 = vmatpush.bf16.msra.mxu0 %v1775
    %2115 = vmatmul.bf16.gmra.mxu0 %v1273
    %v2116 = vpop.f32.mrf.mxu0
    %v2117 = vadd.f32 %v1409, %v2116
    %v2118 = vpop.f32.mrf.mxu0
    %v2119 = vadd.f32 %v1409, %v2118
    %2120 = vdwg.mxu0
    %2121 = vmatpush.bf16.msra.mxu0 %v1880
    %2122 = vmatpush.bf16.msra.mxu0 %v1873
    %2123 = vmatpush.bf16.msra.mxu0 %v1866
    %2124 = vmatpush.bf16.msra.mxu0 %v1859
    %2125 = vmatpush.bf16.msra.mxu0 %v1852
    %2126 = vmatpush.bf16.msra.mxu0 %v1845
    %2127 = vmatpush.bf16.msra.mxu0 %v1838
    %2128 = vmatpush.bf16.msra.mxu0 %v1831
    %2129 = vmatmul.bf16.gmra.mxu0 %v1274
    %v2130 = vpop.f32.mrf.mxu0
    %v2131 = vadd.f32 %v2117, %v2130
    %v2132 = vpop.f32.mrf.mxu0
    %v2133 = vadd.f32 %v2119, %v2132
    %2134 = vdwg.mxu0
    %2135 = vmatpush.bf16.msra.mxu0 %v1825
    %2136 = vmatpush.bf16.msra.mxu0 %v1818
    %2137 = vmatpush.bf16.msra.mxu0 %v1811
    %2138 = vmatpush.bf16.msra.mxu0 %v1804
    %2139 = vmatpush.bf16.msra.mxu0 %v1797
    %2140 = vmatpush.bf16.msra.mxu0 %v1790
    %2141 = vmatpush.bf16.msra.mxu0 %v1783
    %2142 = vmatpush.bf16.msra.mxu0 %v1776
    %2143 = vmatmul.bf16.gmra.mxu0 %v1273
    %v2144 = vpop.f32.mrf.mxu0
    %v2145 = vadd.f32 %v1410, %v2144
    %v2146 = vpop.f32.mrf.mxu0
    %v2147 = vadd.f32 %v1410, %v2146
    %2148 = vdwg.mxu0
    %2149 = vmatpush.bf16.msra.mxu0 %v1881
    %2150 = vmatpush.bf16.msra.mxu0 %v1874
    %2151 = vmatpush.bf16.msra.mxu0 %v1867
    %2152 = vmatpush.bf16.msra.mxu0 %v1860
    %2153 = vmatpush.bf16.msra.mxu0 %v1853
    %2154 = vmatpush.bf16.msra.mxu0 %v1846
    %2155 = vmatpush.bf16.msra.mxu0 %v1839
    %2156 = vmatpush.bf16.msra.mxu0 %v1832
    %2157 = vmatmul.bf16.gmra.mxu0 %v1274
    %v2158 = vpop.f32.mrf.mxu0
    %v2159 = vadd.f32 %v2145, %v2158
    %v2160 = vpop.f32.mrf.mxu0
    %v2161 = vadd.f32 %v2147, %v2160
    %2162 = vdwg.mxu0
    %2163 = vmatpush.bf16.msra.mxu0 %v1826
    %2164 = vmatpush.bf16.msra.mxu0 %v1819
    %2165 = vmatpush.bf16.msra.mxu0 %v1812
    %2166 = vmatpush.bf16.msra.mxu0 %v1805
    %2167 = vmatpush.bf16.msra.mxu0 %v1798
    %2168 = vmatpush.bf16.msra.mxu0 %v1791
    %2169 = vmatpush.bf16.msra.mxu0 %v1784
    %2170 = vmatpush.bf16.msra.mxu0 %v1777
    %2171 = vmatmul.bf16.gmra.mxu0 %v1273
    %v2172 = vpop.f32.mrf.mxu0
    %v2173 = vadd.f32 %v1411, %v2172
    %v2174 = vpop.f32.mrf.mxu0
    %v2175 = vadd.f32 %v1411, %v2174
    %2176 = vdwg.mxu0
    %2177 = vmatpush.bf16.msra.mxu0 %v1882
    %2178 = vmatpush.bf16.msra.mxu0 %v1875
    %2179 = vmatpush.bf16.msra.mxu0 %v1868
    %2180 = vmatpush.bf16.msra.mxu0 %v1861
    %2181 = vmatpush.bf16.msra.mxu0 %v1854
    %2182 = vmatpush.bf16.msra.mxu0 %v1847
    %2183 = vmatpush.bf16.msra.mxu0 %v1840
    %2184 = vmatpush.bf16.msra.mxu0 %v1833
    %2185 = vmatmul.bf16.gmra.mxu0 %v1274
    %v2186 = vpop.f32.mrf.mxu0
    %v2187 = vadd.f32 %v2173, %v2186
    %v2188 = vpop.f32.mrf.mxu0
    %v2189 = vadd.f32 %v2175, %v2188
    %2190 = vdwg.mxu0
    %v2191 = vsub.f32 0.0, %v2019
    %v2192 = vsub.f32 0.0, %v2047
    %v2193 = vsub.f32 0.0, %v2075
    %v2194 = vsub.f32 0.0, %v2103
    %v2195 = vsub.f32 0.0, %v2131
    %v2196 = vsub.f32 0.0, %v2159
    %v2197 = vsub.f32 0.0, %v2187
    %v2198 = vsub.f32 0.0, %v2021
    %v2199 = vsub.f32 0.0, %v2049
    %v2200 = vsub.f32 0.0, %v2077
    %v2201 = vsub.f32 0.0, %v2105
    %v2202 = vsub.f32 0.0, %v2133
    %v2203 = vsub.f32 0.0, %v2161
    %v2204 = vsub.f32 0.0, %v2189
    %v2205 = vmul.f32 %v2191, 1.442695
    %v2206 = vpow.pop %v2205
    %v2207 = vmul.f32 %v2192, 1.442695
    %v2208 = vpow.pop %v2207
    %v2209 = vmul.f32 %v2193, 1.442695
    %v2210 = vpow.pop %v2209
    %v2211 = vmul.f32 %v2194, 1.442695
    %v2212 = vpow.pop %v2211
    %v2213 = vmul.f32 %v2195, 1.442695
    %v2214 = vpow.pop %v2213
    %v2215 = vmul.f32 %v2196, 1.442695
    %v2216 = vpow.pop %v2215
    %v2217 = vmul.f32 %v2197, 1.442695
    %v2218 = vpow.pop %v2217
    %v2219 = vmul.f32 %v2198, 1.442695
    %v2220 = vpow.pop %v2219
    %v2221 = vmul.f32 %v2199, 1.442695
    %v2222 = vpow.pop %v2221
    %v2223 = vmul.f32 %v2200, 1.442695
    %v2224 = vpow.pop %v2223
    %v2225 = vmul.f32 %v2201, 1.442695
    %v2226 = vpow.pop %v2225
    %v2227 = vmul.f32 %v2202, 1.442695
    %v2228 = vpow.pop %v2227
    %v2229 = vmul.f32 %v2203, 1.442695
    %v2230 = vpow.pop %v2229
    %v2231 = vmul.f32 %v2204, 1.442695
    %v2232 = vpow.pop %v2231
    %v2233 = vadd.f32 %v2206, 1.0
    %v2234 = vadd.f32 %v2208, 1.0
    %v2235 = vadd.f32 %v2210, 1.0
    %v2236 = vadd.f32 %v2212, 1.0
    %v2237 = vadd.f32 %v2214, 1.0
    %v2238 = vadd.f32 %v2216, 1.0
    %v2239 = vadd.f32 %v2218, 1.0
    %v2240 = vadd.f32 %v2220, 1.0
    %v2241 = vadd.f32 %v2222, 1.0
    %v2242 = vadd.f32 %v2224, 1.0
    %v2243 = vadd.f32 %v2226, 1.0
    %v2244 = vadd.f32 %v2228, 1.0
    %v2245 = vadd.f32 %v2230, 1.0
    %v2246 = vadd.f32 %v2232, 1.0
    %v2247 = vrcp.pop %v2233
    %v2248 = vrcp.pop %v2234
    %v2249 = vrcp.pop %v2235
    %v2250 = vrcp.pop %v2236
    %v2251 = vrcp.pop %v2237
    %v2252 = vrcp.pop %v2238
    %v2253 = vrcp.pop %v2239
    %v2254 = vrcp.pop %v2240
    %v2255 = vrcp.pop %v2241
    %v2256 = vrcp.pop %v2242
    %v2257 = vrcp.pop %v2243
    %v2258 = vrcp.pop %v2244
    %v2259 = vrcp.pop %v2245
    %v2260 = vrcp.pop %v2246
    %v2261 = vpack.c.bf16 %v2248, %v2247
    %v2262 = vpack.c.bf16 %v2250, %v2249
    %v2263 = vpack.c.bf16 %v2252, %v2251
    %v2264 = vpack.c.bf16 %v2253, %v2253
    %v2265 = vpack.c.bf16 %v2255, %v2254
    %v2266 = vpack.c.bf16 %v2257, %v2256
    %v2267 = vpack.c.bf16 %v2259, %v2258
    %v2268 = vpack.c.bf16 %v2260, %v2260
    %2269 = vst [vmem:[#allocation10] sm:$0xff] %v2261
    %2270 = vst [vmem:[#allocation10 + $0x8] sm:$0xff] %v2262
    %2271 = vst [vmem:[#allocation10 + $0x10] sm:$0xff] %v2263
    %2272 = vst [vmem:[#allocation10 + $0x18] sm:$0xf] %v2264
    %2273 = vst [vmem:[#allocation10 + $0x1c] sm:$0xff] %v2265
    %2274 = vst [vmem:[#allocation10 + $0x24] sm:$0xff] %v2266
    %2275 = vst [vmem:[#allocation10 + $0x2c] sm:$0xff] %v2267
    %2276 = vst [vmem:[#allocation10 + $0x34] sm:$0xf] %v2268
    // Predicated region
    $region58: #{tpu_custom_call.1} parent=1 // pred_check
      _
    $region59: #{tpu_custom_call.1} parent=1 // pred_check_branch
      %2278 = sbr.rel (0) target = $region61
    $region60: #{tpu_custom_call.1} parent=1 // pred_region
      %2280 = vsyncadd [#allocation4], 0
      %s2281 = sshll.u32 [#allocation10], 4
      %s2282 = int_to_ptr.vmem [resolvable:$true] %s2281
      %s2283 = sshll.u32 %s10, 4
      %s2284 = int_to_ptr.hbm [resolvable:$true] %s2283
      %2289 = dma.vmem_to_hbm [thread:$0]  %s2282, 896, %s2284, [#allocation4], 448, 448, 28
    $region61: #{tpu_custom_call.1} parent=1 // pred_fallthru
      _
    // Predicated region
    $region62: #{tpu_custom_call.1} parent=1 // pred_check
      _
    $region63: #{tpu_custom_call.1} parent=1 // pred_check_branch
      %2291 = sbr.rel (0) target = $region65
    $region64: #{tpu_custom_call.1} parent=1 // pred_region
      _
    $region65: #{tpu_custom_call.1} parent=1 // pred_fallthru
      _
    // Predicated region
    $region66: #{tpu_custom_call.1} parent=1 // pred_check
      _
    $region67: #{tpu_custom_call.1} parent=1 // pred_check_branch
      %2293 = sbr.rel (0) target = $region69
    $region68: #{tpu_custom_call.1} parent=1 // pred_region
      %2295 = dma.done [#allocation4], 896
    $region69: #{tpu_custom_call.1} parent=1 // pred_fallthru
      _
    // Predicated region
    $region70: #{tpu_custom_call.1} parent=1 // pred_check
      _
    $region71: #{tpu_custom_call.1} parent=1 // pred_check_branch
      %2297 = sbr.rel (0) target = $region73
    $region72: #{tpu_custom_call.1} parent=1 // pred_region
      _
    $region73: #{tpu_custom_call.1} parent=1 // pred_fallthru
      _
    %2298 = vsyncpa [#allocation3], 1
    %2299 = vsyncpa [#allocation6], 1
    %2300 = vsyncpa [#allocation9], 1
    %2301 = vsyncpa [#allocation4], 1

</llo_original>
